<compile_context>
chip_gen: v5e
topology: v5e:2x2
jax: 0.10.0
libtpu: 0.0.40
codegen_flags: <defaults>
</compile_context>

<pallas_src>
import functools

import jax
import jax.numpy as jnp
from jax.experimental import pallas as pl
from jax.experimental.pallas import tpu as pltpu


# ------------------------------ Pallas kernel -------------------------------

def _down_fused_kernel(xe_a_ref, xe_b_ref, xo_a_ref, xo_b_ref,
                       w1_ref, s1_ref, w2_ref, s2_ref,
                       o_ref, f1_ref, f2_ref,
                       *, tho, Wo, Ho, Cin, Cmid, Cout):
    """One row-tile of: maxpool(2) -> conv3x3+BN+ReLU -> conv3x3+BN+ReLU.

    xe_*/xo_* : even/odd input columns, (1, 2*tho, Wo+2, Cin) blocks
                (block `a` = this tile's rows, block `b` = next block -> halo).
    w*_ref    : (9, Cin_k, Cout_k) BN-scale-folded conv weights (tap-major).
    s*_ref    : (1, Cout_k) folded BN shifts.
    o_ref     : (1, tho, Wo, Cout) output tile.
    f1_ref/f2_ref : VMEM staging buffers (row-major flattened patches).
    """
    Wp = Wo + 2          # padded width (1 zero col each side)
    P = tho + 4          # pooled rows held per tile (+-2 row halo)
    R1 = tho + 2         # conv1 output rows held per tile (+-1 row halo)
    t = pl.program_id(1)

    # ---------------- fused nn.MaxPool2d(2) ----------------
    def _pool(xe_val, xo_val, rows):
        c = jnp.maximum(xe_val, xo_val)              # max over the 2 window cols
        c = c.reshape(rows, 2, Wp, Cin)              # split row pairs (leading dims)
        return jnp.maximum(c[:, 0], c[:, 1])         # (rows, Wp, Cin)

    pooled_a = _pool(xe_a_ref[0], xo_a_ref[0], tho)          # pooled local rows [0, tho)
    pooled_b = _pool(xe_b_ref[0, 0:8], xo_b_ref[0, 0:8], 4)  # pooled local rows [tho, tho+4)

    # ---------------- conv1 (3x3 SAME, bias=False) + folded BN + ReLU ----------------
    # Stage pooled rows contiguously (stride Wp) so every (ky,kx) tap of the 3x3
    # conv is a contiguous 2D slice -> 9 plain MXU matmuls, no HBM im2col.
    f1_ref[0:1, :] = jnp.zeros((1, Cin), jnp.float32)
    f1_ref[1 + P * Wp: 2 + P * Wp, :] = jnp.zeros((1, Cin), jnp.float32)
    for r in range(tho):
        f1_ref[1 + r * Wp: 1 + (r + 1) * Wp, :] = pooled_a[r]
    for r in range(4):
        rr = tho + r
        f1_ref[1 + rr * Wp: 1 + (rr + 1) * Wp, :] = pooled_b[r]

    acc1 = jnp.zeros((R1 * Wp, Cmid), jnp.float32)
    for k in range(9):
        ky, kx = k // 3, k % 3
        tap = f1_ref[ky * Wp + kx: ky * Wp + kx + R1 * Wp, :]
        acc1 = acc1 + jnp.dot(tap, w1_ref[k], preferred_element_type=jnp.float32)
    y1 = jnp.maximum(acc1 + s1_ref[...], 0.0)        # (R1*Wp, Cmid)

    # ---------------- stage conv1 output for conv2 ----------------
    # Rows/cols that fall outside the image must be conv2's SAME zero padding.
    col = jax.lax.broadcasted_iota(jnp.int32, (Wp, 1), 0)
    col_ok = jnp.logical_and(col >= 1, col <= Wo)
    f2_ref[0:1, :] = jnp.zeros((1, Cmid), jnp.float32)
    f2_ref[1 + R1 * Wp: 2 + R1 * Wp, :] = jnp.zeros((1, Cmid), jnp.float32)
    for r in range(R1):
        gi = t * tho - 1 + r                          # global conv1 row of local row r
        row_ok = jnp.logical_and(gi >= 0, gi < Ho)
        row = y1[r * Wp: (r + 1) * Wp, :]
        f2_ref[1 + r * Wp: 1 + (r + 1) * Wp, :] = jnp.where(
            jnp.logical_and(col_ok, row_ok), row, 0.0)

    # ---------------- conv2 (3x3 SAME, bias=False) + folded BN + ReLU ----------------
    acc2 = jnp.zeros((tho * Wp, Cout), jnp.float32)
    for k in range(9):
        ky, kx = k // 3, k % 3
        tap = f2_ref[ky * Wp + kx: ky * Wp + kx + tho * Wp, :]
        acc2 = acc2 + jnp.dot(tap, w2_ref[k], preferred_element_type=jnp.float32)
    y2 = jnp.maximum(acc2 + s2_ref[...], 0.0)        # (tho*Wp, Cout)

    # ---------------- write output tile (drop the 2 garbage columns per row) ----------------
    for r in range(tho):
        o_ref[0, r] = y2[r * Wp + 1: r * Wp + 1 + Wo, :].astype(o_ref.dtype)


# ------------------------------ wrapper (JAX) --------------------------------

def _pick_row_tile(Ho, N):
    """Largest output-row tile (<=32, divides Ho, >=4) that still yields enough
    parallel grid steps to feed both v7x TensorCores."""
    divs = [d for d in range(min(Ho, 32), 3, -1) if Ho % d == 0]
    for min_steps in (8, 4, 1):
        for d in divs:
            if N * (Ho // d) >= min_steps:
                return d
    return Ho


def down_forward(x_nchw, w1, g1, b1, m1, v1, w2, g2, b2, m2, v2, *, eps=1e-5):
    N, Cin, H, W = x_nchw.shape
    # TODO(synk): PyTorch MaxPool2d(2) floors odd spatial dims; this kernel assumes even H, W.
    assert H % 2 == 0 and W % 2 == 0, "even H/W required"
    Ho, Wo = H // 2, W // 2
    assert Ho >= 4, "kernel requires H >= 8"
    Cmid, Cout = w1.shape[0], w2.shape[0]
    tho = _pick_row_tile(Ho, N)
    nt = Ho // tho
    Wp = Wo + 2

    # Fold BatchNorm (eval) into the conv weights / per-channel shift.
    scale1 = g1 / jnp.sqrt(v1 + eps)
    shift1 = (b1 - m1 * scale1).reshape(1, Cmid).astype(jnp.float32)
    scale2 = g2 / jnp.sqrt(v2 + eps)
    shift2 = (b2 - m2 * scale2).reshape(1, Cout).astype(jnp.float32)
    # (Cout, Cin, 3, 3) -> (9, Cin, Cout), tap-major, BN scale folded in.
    w1_t = (jnp.transpose(w1, (2, 3, 1, 0)).reshape(9, Cin, Cmid)
            * scale1[None, None, :]).astype(jnp.float32)
    w2_t = (jnp.transpose(w2, (2, 3, 1, 0)).reshape(9, Cmid, Cout)
            * scale2[None, None, :]).astype(jnp.float32)

    # Layout glue only: NCHW -> NHWC, even/odd pooling columns, zero pre-padding
    # (4 rows of input = 2 pooled rows of halo; 1 pooled col each side).
    x = jnp.transpose(x_nchw, (0, 2, 3, 1)).astype(jnp.float32)   # (N, H, W, Cin)
    pad = ((0, 0), (4, 2 * tho - 4), (1, 1), (0, 0))
    xe = jnp.pad(x[:, :, 0::2, :], pad)                            # (N, 2*(Ho+tho), Wp, Cin)
    xo = jnp.pad(x[:, :, 1::2, :], pad)

    # TODO(synk): WTConv(in_channels, in_channels) source was not provided with the
    # reference module, so it cannot be reproduced faithfully and is omitted here.

    kern = functools.partial(_down_fused_kernel, tho=tho, Wo=Wo, Ho=Ho,
                             Cin=Cin, Cmid=Cmid, Cout=Cout)
    blk_in = (1, 2 * tho, Wp, Cin)
    out = pl.pallas_call(
        kern,
        out_shape=jax.ShapeDtypeStruct((N, Ho, Wo, Cout), jnp.float32),
        grid=(N, nt),
        in_specs=[
            pl.BlockSpec(blk_in, lambda n, t: (n, t, 0, 0)),      # even cols, this tile
            pl.BlockSpec(blk_in, lambda n, t: (n, t + 1, 0, 0)),  # even cols, halo rows
            pl.BlockSpec(blk_in, lambda n, t: (n, t, 0, 0)),      # odd cols, this tile
            pl.BlockSpec(blk_in, lambda n, t: (n, t + 1, 0, 0)),  # odd cols, halo rows
            pl.BlockSpec((9, Cin, Cmid), lambda n, t: (0, 0, 0)),
            pl.BlockSpec((1, Cmid), lambda n, t: (0, 0)),
            pl.BlockSpec((9, Cmid, Cout), lambda n, t: (0, 0, 0)),
            pl.BlockSpec((1, Cout), lambda n, t: (0, 0)),
        ],
        out_specs=pl.BlockSpec((1, tho, Wo, Cout), lambda n, t: (n, t, 0, 0)),
        scratch_shapes=[
            pltpu.VMEM(((tho + 4) * Wp + 2, Cin), jnp.float32),
            pltpu.VMEM(((tho + 2) * Wp + 2, Cmid), jnp.float32),
        ],
        compiler_params=pltpu.CompilerParams(
            dimension_semantics=("parallel", "parallel"),
            vmem_limit_bytes=32 * 1024 * 1024,
        ),
    )(xe, xe, xo, xo, w1_t, shift1, w2_t, shift2)

    return jnp.transpose(out, (0, 3, 1, 2))   # back to NCHW


# --------------------------- pure-JAX reference ----------------------------

def _reference(x, w1, g1, b1, m1, v1, w2, g2, b2, m2, v2, eps=1e-5):
    s1 = g1 / jnp.sqrt(v1 + eps)
    sh1 = b1 - m1 * s1
    s2 = g2 / jnp.sqrt(v2 + eps)
    sh2 = b2 - m2 * s2
    y = jax.lax.reduce_window(x, -jnp.inf, jax.lax.max,
                              (1, 1, 2, 2), (1, 1, 2, 2), "VALID")

    def cbr(y, w, s, b):
        y = jax.lax.conv_general_dilated(
            y, w, (1, 1), "SAME", dimension_numbers=("NCHW", "OIHW", "NCHW"))
        return jnp.maximum(y * s.reshape(1, -1, 1, 1) + b.reshape(1, -1, 1, 1), 0.0)

    return cbr(cbr(y, w1, s1, sh1), w2, s2, sh2)


# --------------------------------- main -------------------------------------

if __name__ == "__main__":
    key = jax.random.PRNGKey(0)
    N, Cin, H, W = 2, 4, 16, 16
    Cout = 8
    Cmid = Cout  # DoubleConv: mid_channels defaults to out_channels

    keys = jax.random.split(key, 11)
    x = jax.random.normal(keys[0], (N, Cin, H, W), jnp.float32)
    w1 = 0.1 * jax.random.normal(keys[1], (Cmid, Cin, 3, 3), jnp.float32)
    w2 = 0.1 * jax.random.normal(keys[2], (Cout, Cmid, 3, 3), jnp.float32)
    g1 = 1.0 + 0.1 * jax.random.normal(keys[3], (Cmid,), jnp.float32)
    b1 = 0.1 * jax.random.normal(keys[4], (Cmid,), jnp.float32)
    m1 = 0.1 * jax.random.normal(keys[5], (Cmid,), jnp.float32)
    v1 = 1.0 + 0.1 * jax.random.uniform(keys[6], (Cmid,), jnp.float32)
    g2 = 1.0 + 0.1 * jax.random.normal(keys[7], (Cout,), jnp.float32)
    b2 = 0.1 * jax.random.normal(keys[8], (Cout,), jnp.float32)
    m2 = 0.1 * jax.random.normal(keys[9], (Cout,), jnp.float32)
    v2 = 1.0 + 0.1 * jax.random.uniform(keys[10], (Cout,), jnp.float32)

    fwd = jax.jit(down_forward)
    out = jax.block_until_ready(fwd(x, w1, g1, b1, m1, v1, w2, g2, b2, m2, v2))
    assert out.shape == (N, Cout, H // 2, W // 2), out.shape

    ref = _reference(x, w1, g1, b1, m1, v1, w2, g2, b2, m2, v2)
    max_err = float(jnp.max(jnp.abs(out - ref)))
    assert jnp.allclose(out, ref, atol=1e-4, rtol=1e-4), max_err

    print("KERNEL_OK")
</pallas_src>

<mosaic_0001>
module attributes {stable_mosaic.version = 11 : i64} {
  func.func @_down_fused_kernel(%arg0: i32, %arg1: i32, %arg2: memref<1x8x10x4xf32, #tpu.memory_space<vmem>>, %arg3: memref<1x8x10x4xf32, #tpu.memory_space<vmem>>, %arg4: memref<1x8x10x4xf32, #tpu.memory_space<vmem>>, %arg5: memref<1x8x10x4xf32, #tpu.memory_space<vmem>>, %arg6: memref<9x4x8xf32, #tpu.memory_space<vmem>>, %arg7: memref<1x8xf32, #tpu.memory_space<vmem>>, %arg8: memref<9x8x8xf32, #tpu.memory_space<vmem>>, %arg9: memref<1x8xf32, #tpu.memory_space<vmem>>, %arg10: memref<1x4x8x8xf32, #tpu.memory_space<vmem>>, %arg11: memref<82x4xf32, #tpu.memory_space<vmem>>, %arg12: memref<62x8xf32, #tpu.memory_space<vmem>>) attributes {dimension_semantics = [#tpu.dimension_semantics<parallel>, #tpu.dimension_semantics<parallel>], iteration_bounds = array<i64: 2, 2>, scalar_prefetch = 0 : i64, scratch_operands = 2 : i64, tpu.core_type = #tpu.core_type<tc>, window_params = [{transform_indices = @transform_0, window_bounds = array<i64: 1, 8, 10, 4>}, {transform_indices = @transform_1, window_bounds = array<i64: 1, 8, 10, 4>}, {transform_indices = @transform_2, window_bounds = array<i64: 1, 8, 10, 4>}, {transform_indices = @transform_3, window_bounds = array<i64: 1, 8, 10, 4>}, {pipeline_mode = #tpu.pipeline_mode<synchronous>, transform_indices = @transform_4, window_bounds = array<i64: 9, 4, 8>}, {pipeline_mode = #tpu.pipeline_mode<synchronous>, transform_indices = @transform_5, window_bounds = array<i64: 1, 8>}, {pipeline_mode = #tpu.pipeline_mode<synchronous>, transform_indices = @transform_6, window_bounds = array<i64: 9, 8, 8>}, {pipeline_mode = #tpu.pipeline_mode<synchronous>, transform_indices = @transform_7, window_bounds = array<i64: 1, 8>}, {transform_indices = @transform_8, window_bounds = array<i64: 1, 4, 8, 8>}]} {
    %c0 = arith.constant 0 : index
    %c0_0 = arith.constant 0 : index
    %c0_1 = arith.constant 0 : index
    %c0_2 = arith.constant 0 : index
    %0 = vector.load %arg2[%c0, %c0_0, %c0_1, %c0_2] : memref<1x8x10x4xf32, #tpu.memory_space<vmem>>, vector<1x8x10x4xf32>
    %1 = vector.shape_cast %0 : vector<1x8x10x4xf32> to vector<8x10x4xf32>
    %c0_3 = arith.constant 0 : index
    %c0_4 = arith.constant 0 : index
    %c0_5 = arith.constant 0 : index
    %c0_6 = arith.constant 0 : index
    %2 = vector.load %arg4[%c0_3, %c0_4, %c0_5, %c0_6] : memref<1x8x10x4xf32, #tpu.memory_space<vmem>>, vector<1x8x10x4xf32>
    %3 = vector.shape_cast %2 : vector<1x8x10x4xf32> to vector<8x10x4xf32>
    %4 = arith.maximumf %1, %3 : vector<8x10x4xf32>
    %5 = vector.shape_cast %4 : vector<8x10x4xf32> to vector<4x2x10x4xf32>
    %6 = vector.extract_strided_slice %5 {offsets = [0, 0, 0, 0], sizes = [4, 1, 10, 4], strides = [1, 1, 1, 1]} : vector<4x2x10x4xf32> to vector<4x1x10x4xf32>
    %7 = vector.shape_cast %6 : vector<4x1x10x4xf32> to vector<4x10x4xf32>
    %8 = vector.extract_strided_slice %5 {offsets = [0, 1, 0, 0], sizes = [4, 1, 10, 4], strides = [1, 1, 1, 1]} : vector<4x2x10x4xf32> to vector<4x1x10x4xf32>
    %9 = vector.shape_cast %8 : vector<4x1x10x4xf32> to vector<4x10x4xf32>
    %10 = arith.maximumf %7, %9 : vector<4x10x4xf32>
    %c0_7 = arith.constant 0 : index
    %c0_8 = arith.constant 0 : index
    %c0_9 = arith.constant 0 : index
    %c0_10 = arith.constant 0 : index
    %11 = vector.load %arg3[%c0_7, %c0_8, %c0_9, %c0_10] : memref<1x8x10x4xf32, #tpu.memory_space<vmem>>, vector<1x8x10x4xf32>
    %12 = vector.shape_cast %11 : vector<1x8x10x4xf32> to vector<8x10x4xf32>
    %c0_11 = arith.constant 0 : index
    %c0_12 = arith.constant 0 : index
    %c0_13 = arith.constant 0 : index
    %c0_14 = arith.constant 0 : index
    %13 = vector.load %arg5[%c0_11, %c0_12, %c0_13, %c0_14] : memref<1x8x10x4xf32, #tpu.memory_space<vmem>>, vector<1x8x10x4xf32>
    %14 = vector.shape_cast %13 : vector<1x8x10x4xf32> to vector<8x10x4xf32>
    %15 = arith.maximumf %12, %14 : vector<8x10x4xf32>
    %16 = vector.shape_cast %15 : vector<8x10x4xf32> to vector<4x2x10x4xf32>
    %17 = vector.extract_strided_slice %16 {offsets = [0, 0, 0, 0], sizes = [4, 1, 10, 4], strides = [1, 1, 1, 1]} : vector<4x2x10x4xf32> to vector<4x1x10x4xf32>
    %18 = vector.shape_cast %17 : vector<4x1x10x4xf32> to vector<4x10x4xf32>
    %19 = vector.extract_strided_slice %16 {offsets = [0, 1, 0, 0], sizes = [4, 1, 10, 4], strides = [1, 1, 1, 1]} : vector<4x2x10x4xf32> to vector<4x1x10x4xf32>
    %20 = vector.shape_cast %19 : vector<4x1x10x4xf32> to vector<4x10x4xf32>
    %21 = arith.maximumf %18, %20 : vector<4x10x4xf32>
    %cst = arith.constant 0.000000e+00 : f32
    %22 = vector.broadcast %cst : f32 to vector<1x4xf32>
    %c0_15 = arith.constant 0 : index
    %c0_16 = arith.constant 0 : index
    %23 = vector.load %arg11[%c0_15, %c0_16] : memref<82x4xf32, #tpu.memory_space<vmem>>, vector<1x4xf32>
    tpu.vector_store %arg11[%c0_15, %c0_16], %22 {strides = array<i32>} : memref<82x4xf32, #tpu.memory_space<vmem>>, vector<1x4xf32>,
    %cst_17 = arith.constant 0.000000e+00 : f32
    %24 = vector.broadcast %cst_17 : f32 to vector<1x4xf32>
    %c81 = arith.constant 81 : index
    %c0_18 = arith.constant 0 : index
    %25 = vector.load %arg11[%c81, %c0_18] : memref<82x4xf32, #tpu.memory_space<vmem>>, vector<1x4xf32>
    tpu.vector_store %arg11[%c81, %c0_18], %24 {strides = array<i32>} : memref<82x4xf32, #tpu.memory_space<vmem>>, vector<1x4xf32>,
    %26 = vector.extract_strided_slice %10 {offsets = [0, 0, 0], sizes = [1, 10, 4], strides = [1, 1, 1]} : vector<4x10x4xf32> to vector<1x10x4xf32>
    %27 = vector.shape_cast %26 : vector<1x10x4xf32> to vector<10x4xf32>
    %c1 = arith.constant 1 : index
    %c0_19 = arith.constant 0 : index
    %28 = vector.load %arg11[%c1, %c0_19] : memref<82x4xf32, #tpu.memory_space<vmem>>, vector<10x4xf32>
    tpu.vector_store %arg11[%c1, %c0_19], %27 {strides = array<i32>} : memref<82x4xf32, #tpu.memory_space<vmem>>, vector<10x4xf32>,
    %29 = vector.extract_strided_slice %10 {offsets = [1, 0, 0], sizes = [1, 10, 4], strides = [1, 1, 1]} : vector<4x10x4xf32> to vector<1x10x4xf32>
    %30 = vector.shape_cast %29 : vector<1x10x4xf32> to vector<10x4xf32>
    %c11 = arith.constant 11 : index
    %c0_20 = arith.constant 0 : index
    %31 = vector.load %arg11[%c11, %c0_20] : memref<82x4xf32, #tpu.memory_space<vmem>>, vector<10x4xf32>
    tpu.vector_store %arg11[%c11, %c0_20], %30 {strides = array<i32>} : memref<82x4xf32, #tpu.memory_space<vmem>>, vector<10x4xf32>,
    %32 = vector.extract_strided_slice %10 {offsets = [2, 0, 0], sizes = [1, 10, 4], strides = [1, 1, 1]} : vector<4x10x4xf32> to vector<1x10x4xf32>
    %33 = vector.shape_cast %32 : vector<1x10x4xf32> to vector<10x4xf32>
    %c21 = arith.constant 21 : index
    %c0_21 = arith.constant 0 : index
    %34 = vector.load %arg11[%c21, %c0_21] : memref<82x4xf32, #tpu.memory_space<vmem>>, vector<10x4xf32>
    tpu.vector_store %arg11[%c21, %c0_21], %33 {strides = array<i32>} : memref<82x4xf32, #tpu.memory_space<vmem>>, vector<10x4xf32>,
    %35 = vector.extract_strided_slice %10 {offsets = [3, 0, 0], sizes = [1, 10, 4], strides = [1, 1, 1]} : vector<4x10x4xf32> to vector<1x10x4xf32>
    %36 = vector.shape_cast %35 : vector<1x10x4xf32> to vector<10x4xf32>
    %c31 = arith.constant 31 : index
    %c0_22 = arith.constant 0 : index
    %37 = vector.load %arg11[%c31, %c0_22] : memref<82x4xf32, #tpu.memory_space<vmem>>, vector<10x4xf32>
    tpu.vector_store %arg11[%c31, %c0_22], %36 {strides = array<i32>} : memref<82x4xf32, #tpu.memory_space<vmem>>, vector<10x4xf32>,
    %38 = vector.extract_strided_slice %21 {offsets = [0, 0, 0], sizes = [1, 10, 4], strides = [1, 1, 1]} : vector<4x10x4xf32> to vector<1x10x4xf32>
    %39 = vector.shape_cast %38 : vector<1x10x4xf32> to vector<10x4xf32>
    %c41 = arith.constant 41 : index
    %c0_23 = arith.constant 0 : index
    %40 = vector.load %arg11[%c41, %c0_23] : memref<82x4xf32, #tpu.memory_space<vmem>>, vector<10x4xf32>
    tpu.vector_store %arg11[%c41, %c0_23], %39 {strides = array<i32>} : memref<82x4xf32, #tpu.memory_space<vmem>>, vector<10x4xf32>,
    %41 = vector.extract_strided_slice %21 {offsets = [1, 0, 0], sizes = [1, 10, 4], strides = [1, 1, 1]} : vector<4x10x4xf32> to vector<1x10x4xf32>
    %42 = vector.shape_cast %41 : vector<1x10x4xf32> to vector<10x4xf32>
    %c51 = arith.constant 51 : index
    %c0_24 = arith.constant 0 : index
    %43 = vector.load %arg11[%c51, %c0_24] : memref<82x4xf32, #tpu.memory_space<vmem>>, vector<10x4xf32>
    tpu.vector_store %arg11[%c51, %c0_24], %42 {strides = array<i32>} : memref<82x4xf32, #tpu.memory_space<vmem>>, vector<10x4xf32>,
    %44 = vector.extract_strided_slice %21 {offsets = [2, 0, 0], sizes = [1, 10, 4], strides = [1, 1, 1]} : vector<4x10x4xf32> to vector<1x10x4xf32>
    %45 = vector.shape_cast %44 : vector<1x10x4xf32> to vector<10x4xf32>
    %c61 = arith.constant 61 : index
    %c0_25 = arith.constant 0 : index
    %46 = vector.load %arg11[%c61, %c0_25] : memref<82x4xf32, #tpu.memory_space<vmem>>, vector<10x4xf32>
    tpu.vector_store %arg11[%c61, %c0_25], %45 {strides = array<i32>} : memref<82x4xf32, #tpu.memory_space<vmem>>, vector<10x4xf32>,
    %47 = vector.extract_strided_slice %21 {offsets = [3, 0, 0], sizes = [1, 10, 4], strides = [1, 1, 1]} : vector<4x10x4xf32> to vector<1x10x4xf32>
    %48 = vector.shape_cast %47 : vector<1x10x4xf32> to vector<10x4xf32>
    %c71 = arith.constant 71 : index
    %c0_26 = arith.constant 0 : index
    %49 = vector.load %arg11[%c71, %c0_26] : memref<82x4xf32, #tpu.memory_space<vmem>>, vector<10x4xf32>
    tpu.vector_store %arg11[%c71, %c0_26], %48 {strides = array<i32>} : memref<82x4xf32, #tpu.memory_space<vmem>>, vector<10x4xf32>,
    %cst_27 = arith.constant 0.000000e+00 : f32
    %50 = vector.broadcast %cst_27 : f32 to vector<60x8xf32>
    %c0_28 = arith.constant 0 : index
    %c0_29 = arith.constant 0 : index
    %51 = vector.load %arg11[%c0_28, %c0_29] : memref<82x4xf32, #tpu.memory_space<vmem>>, vector<60x4xf32>
    %c0_30 = arith.constant 0 : index
    %c0_31 = arith.constant 0 : index
    %c0_32 = arith.constant 0 : index
    %52 = vector.load %arg6[%c0_30, %c0_31, %c0_32] : memref<9x4x8xf32, #tpu.memory_space<vmem>>, vector<1x4x8xf32>
    %53 = vector.shape_cast %52 : vector<1x4x8xf32> to vector<4x8xf32>
    %cst_33 = arith.constant dense<0.000000e+00> : vector<60x8xf32>
    %54 = tpu.matmul %51, %53, %cst_33 {dimension_numbers = #tpu.dot_dimension_numbers<[1], [0], [0], [1], [0, 0, 1, 1], [], []>} : vector<60x4xf32>, vector<4x8xf32>, vector<60x8xf32> -> vector<60x8xf32>
    %55 = arith.addf %50, %54 : vector<60x8xf32>
    %c1_34 = arith.constant 1 : index
    %c0_35 = arith.constant 0 : index
    %56 = vector.load %arg11[%c1_34, %c0_35] : memref<82x4xf32, #tpu.memory_space<vmem>>, vector<60x4xf32>
    %c1_36 = arith.constant 1 : index
    %c0_37 = arith.constant 0 : index
    %c0_38 = arith.constant 0 : index
    %57 = vector.load %arg6[%c1_36, %c0_37, %c0_38] : memref<9x4x8xf32, #tpu.memory_space<vmem>>, vector<1x4x8xf32>
    %58 = vector.shape_cast %57 : vector<1x4x8xf32> to vector<4x8xf32>
    %cst_39 = arith.constant dense<0.000000e+00> : vector<60x8xf32>
    %59 = tpu.matmul %56, %58, %cst_39 {dimension_numbers = #tpu.dot_dimension_numbers<[1], [0], [0], [1], [0, 0, 1, 1], [], []>} : vector<60x4xf32>, vector<4x8xf32>, vector<60x8xf32> -> vector<60x8xf32>
    %60 = arith.addf %55, %59 : vector<60x8xf32>
    %c2 = arith.constant 2 : index
    %c0_40 = arith.constant 0 : index
    %61 = vector.load %arg11[%c2, %c0_40] : memref<82x4xf32, #tpu.memory_space<vmem>>, vector<60x4xf32>
    %c2_41 = arith.constant 2 : index
    %c0_42 = arith.constant 0 : index
    %c0_43 = arith.constant 0 : index
    %62 = vector.load %arg6[%c2_41, %c0_42, %c0_43] : memref<9x4x8xf32, #tpu.memory_space<vmem>>, vector<1x4x8xf32>
    %63 = vector.shape_cast %62 : vector<1x4x8xf32> to vector<4x8xf32>
    %cst_44 = arith.constant dense<0.000000e+00> : vector<60x8xf32>
    %64 = tpu.matmul %61, %63, %cst_44 {dimension_numbers = #tpu.dot_dimension_numbers<[1], [0], [0], [1], [0, 0, 1, 1], [], []>} : vector<60x4xf32>, vector<4x8xf32>, vector<60x8xf32> -> vector<60x8xf32>
    %65 = arith.addf %60, %64 : vector<60x8xf32>
    %c10 = arith.constant 10 : index
    %c0_45 = arith.constant 0 : index
    %66 = vector.load %arg11[%c10, %c0_45] : memref<82x4xf32, #tpu.memory_space<vmem>>, vector<60x4xf32>
    %c3 = arith.constant 3 : index
    %c0_46 = arith.constant 0 : index
    %c0_47 = arith.constant 0 : index
    %67 = vector.load %arg6[%c3, %c0_46, %c0_47] : memref<9x4x8xf32, #tpu.memory_space<vmem>>, vector<1x4x8xf32>
    %68 = vector.shape_cast %67 : vector<1x4x8xf32> to vector<4x8xf32>
    %cst_48 = arith.constant dense<0.000000e+00> : vector<60x8xf32>
    %69 = tpu.matmul %66, %68, %cst_48 {dimension_numbers = #tpu.dot_dimension_numbers<[1], [0], [0], [1], [0, 0, 1, 1], [], []>} : vector<60x4xf32>, vector<4x8xf32>, vector<60x8xf32> -> vector<60x8xf32>
    %70 = arith.addf %65, %69 : vector<60x8xf32>
    %c11_49 = arith.constant 11 : index
    %c0_50 = arith.constant 0 : index
    %71 = vector.load %arg11[%c11_49, %c0_50] : memref<82x4xf32, #tpu.memory_space<vmem>>, vector<60x4xf32>
    %c4 = arith.constant 4 : index
    %c0_51 = arith.constant 0 : index
    %c0_52 = arith.constant 0 : index
    %72 = vector.load %arg6[%c4, %c0_51, %c0_52] : memref<9x4x8xf32, #tpu.memory_space<vmem>>, vector<1x4x8xf32>
    %73 = vector.shape_cast %72 : vector<1x4x8xf32> to vector<4x8xf32>
    %cst_53 = arith.constant dense<0.000000e+00> : vector<60x8xf32>
    %74 = tpu.matmul %71, %73, %cst_53 {dimension_numbers = #tpu.dot_dimension_numbers<[1], [0], [0], [1], [0, 0, 1, 1], [], []>} : vector<60x4xf32>, vector<4x8xf32>, vector<60x8xf32> -> vector<60x8xf32>
    %75 = arith.addf %70, %74 : vector<60x8xf32>
    %c12 = arith.constant 12 : index
    %c0_54 = arith.constant 0 : index
    %76 = vector.load %arg11[%c12, %c0_54] : memref<82x4xf32, #tpu.memory_space<vmem>>, vector<60x4xf32>
    %c5 = arith.constant 5 : index
    %c0_55 = arith.constant 0 : index
    %c0_56 = arith.constant 0 : index
    %77 = vector.load %arg6[%c5, %c0_55, %c0_56] : memref<9x4x8xf32, #tpu.memory_space<vmem>>, vector<1x4x8xf32>
    %78 = vector.shape_cast %77 : vector<1x4x8xf32> to vector<4x8xf32>
    %cst_57 = arith.constant dense<0.000000e+00> : vector<60x8xf32>
    %79 = tpu.matmul %76, %78, %cst_57 {dimension_numbers = #tpu.dot_dimension_numbers<[1], [0], [0], [1], [0, 0, 1, 1], [], []>} : vector<60x4xf32>, vector<4x8xf32>, vector<60x8xf32> -> vector<60x8xf32>
    %80 = arith.addf %75, %79 : vector<60x8xf32>
    %c20 = arith.constant 20 : index
    %c0_58 = arith.constant 0 : index
    %81 = vector.load %arg11[%c20, %c0_58] : memref<82x4xf32, #tpu.memory_space<vmem>>, vector<60x4xf32>
    %c6 = arith.constant 6 : index
    %c0_59 = arith.constant 0 : index
    %c0_60 = arith.constant 0 : index
    %82 = vector.load %arg6[%c6, %c0_59, %c0_60] : memref<9x4x8xf32, #tpu.memory_space<vmem>>, vector<1x4x8xf32>
    %83 = vector.shape_cast %82 : vector<1x4x8xf32> to vector<4x8xf32>
    %cst_61 = arith.constant dense<0.000000e+00> : vector<60x8xf32>
    %84 = tpu.matmul %81, %83, %cst_61 {dimension_numbers = #tpu.dot_dimension_numbers<[1], [0], [0], [1], [0, 0, 1, 1], [], []>} : vector<60x4xf32>, vector<4x8xf32>, vector<60x8xf32> -> vector<60x8xf32>
    %85 = arith.addf %80, %84 : vector<60x8xf32>
    %c21_62 = arith.constant 21 : index
    %c0_63 = arith.constant 0 : index
    %86 = vector.load %arg11[%c21_62, %c0_63] : memref<82x4xf32, #tpu.memory_space<vmem>>, vector<60x4xf32>
    %c7 = arith.constant 7 : index
    %c0_64 = arith.constant 0 : index
    %c0_65 = arith.constant 0 : index
    %87 = vector.load %arg6[%c7, %c0_64, %c0_65] : memref<9x4x8xf32, #tpu.memory_space<vmem>>, vector<1x4x8xf32>
    %88 = vector.shape_cast %87 : vector<1x4x8xf32> to vector<4x8xf32>
    %cst_66 = arith.constant dense<0.000000e+00> : vector<60x8xf32>
    %89 = tpu.matmul %86, %88, %cst_66 {dimension_numbers = #tpu.dot_dimension_numbers<[1], [0], [0], [1], [0, 0, 1, 1], [], []>} : vector<60x4xf32>, vector<4x8xf32>, vector<60x8xf32> -> vector<60x8xf32>
    %90 = arith.addf %85, %89 : vector<60x8xf32>
    %c22 = arith.constant 22 : index
    %c0_67 = arith.constant 0 : index
    %91 = vector.load %arg11[%c22, %c0_67] : memref<82x4xf32, #tpu.memory_space<vmem>>, vector<60x4xf32>
    %c8 = arith.constant 8 : index
    %c0_68 = arith.constant 0 : index
    %c0_69 = arith.constant 0 : index
    %92 = vector.load %arg6[%c8, %c0_68, %c0_69] : memref<9x4x8xf32, #tpu.memory_space<vmem>>, vector<1x4x8xf32>
    %93 = vector.shape_cast %92 : vector<1x4x8xf32> to vector<4x8xf32>
    %cst_70 = arith.constant dense<0.000000e+00> : vector<60x8xf32>
    %94 = tpu.matmul %91, %93, %cst_70 {dimension_numbers = #tpu.dot_dimension_numbers<[1], [0], [0], [1], [0, 0, 1, 1], [], []>} : vector<60x4xf32>, vector<4x8xf32>, vector<60x8xf32> -> vector<60x8xf32>
    %95 = arith.addf %90, %94 : vector<60x8xf32>
    %c0_71 = arith.constant 0 : index
    %c0_72 = arith.constant 0 : index
    %96 = vector.load %arg7[%c0_71, %c0_72] : memref<1x8xf32, #tpu.memory_space<vmem>>, vector<1x8xf32>
    %97 = vector.broadcast %96 : vector<1x8xf32> to vector<60x8xf32>
    %98 = arith.addf %95, %97 : vector<60x8xf32>
    %cst_73 = arith.constant 0.000000e+00 : f32
    %99 = vector.broadcast %cst_73 : f32 to vector<60x8xf32>
    %100 = arith.maximumf %98, %99 : vector<60x8xf32>
    %101 = tpu.iota {dimensions = array<i32: 0>} : vector<10x1xi32>
    %c1_i32 = arith.constant 1 : i32
    %102 = vector.broadcast %c1_i32 : i32 to vector<10x1xi32>
    %103 = arith.cmpi sge, %101, %102 : vector<10x1xi32>
    %c8_i32 = arith.constant 8 : i32
    %104 = vector.broadcast %c8_i32 : i32 to vector<10x1xi32>
    %105 = arith.cmpi sle, %101, %104 : vector<10x1xi32>
    %106 = arith.andi %103, %105 : vector<10x1xi1>
    %cst_74 = arith.constant 0.000000e+00 : f32
    %107 = vector.broadcast %cst_74 : f32 to vector<1x8xf32>
    %c0_75 = arith.constant 0 : index
    %c0_76 = arith.constant 0 : index
    %108 = vector.load %arg12[%c0_75, %c0_76] : memref<62x8xf32, #tpu.memory_space<vmem>>, vector<1x8xf32>
    tpu.vector_store %arg12[%c0_75, %c0_76], %107 {strides = array<i32>} : memref<62x8xf32, #tpu.memory_space<vmem>>, vector<1x8xf32>,
    %cst_77 = arith.constant 0.000000e+00 : f32
    %109 = vector.broadcast %cst_77 : f32 to vector<1x8xf32>
    %c61_78 = arith.constant 61 : index
    %c0_79 = arith.constant 0 : index
    %110 = vector.load %arg12[%c61_78, %c0_79] : memref<62x8xf32, #tpu.memory_space<vmem>>, vector<1x8xf32>
    tpu.vector_store %arg12[%c61_78, %c0_79], %109 {strides = array<i32>} : memref<62x8xf32, #tpu.memory_space<vmem>>, vector<1x8xf32>,
    %c4_i32 = arith.constant 4 : i32
    %111 = arith.muli %arg1, %c4_i32 : i32
    %c1_i32_80 = arith.constant 1 : i32
    %112 = arith.subi %111, %c1_i32_80 : i32
    %c0_i32 = arith.constant 0 : i32
    %113 = arith.addi %112, %c0_i32 : i32
    %c0_i32_81 = arith.constant 0 : i32
    %114 = arith.cmpi sge, %113, %c0_i32_81 : i32
    %c8_i32_82 = arith.constant 8 : i32
    %115 = arith.cmpi slt, %113, %c8_i32_82 : i32
    %116 = arith.andi %114, %115 : i1
    %117 = vector.extract_strided_slice %100 {offsets = [0, 0], sizes = [10, 8], strides = [1, 1]} : vector<60x8xf32> to vector<10x8xf32>
    %118 = vector.broadcast %116 : i1 to vector<10x1xi1>
    %119 = arith.andi %106, %118 : vector<10x1xi1>
    %cst_83 = arith.constant 0.000000e+00 : f32
    %120 = vector.shape_cast %119 : vector<10x1xi1> to vector<10x1xi1>
    %121 = vector.broadcast %120 : vector<10x1xi1> to vector<10x8xi1>
    %122 = vector.broadcast %cst_83 : f32 to vector<10x8xf32>
    %123 = arith.select %121, %117, %122 : vector<10x8xi1>, vector<10x8xf32>
    %c1_84 = arith.constant 1 : index
    %c0_85 = arith.constant 0 : index
    %124 = vector.load %arg12[%c1_84, %c0_85] : memref<62x8xf32, #tpu.memory_space<vmem>>, vector<10x8xf32>
    tpu.vector_store %arg12[%c1_84, %c0_85], %123 {strides = array<i32>} : memref<62x8xf32, #tpu.memory_space<vmem>>, vector<10x8xf32>,
    %c4_i32_86 = arith.constant 4 : i32
    %125 = arith.muli %arg1, %c4_i32_86 : i32
    %c1_i32_87 = arith.constant 1 : i32
    %126 = arith.subi %125, %c1_i32_87 : i32
    %c1_i32_88 = arith.constant 1 : i32
    %127 = arith.addi %126, %c1_i32_88 : i32
    %c0_i32_89 = arith.constant 0 : i32
    %128 = arith.cmpi sge, %127, %c0_i32_89 : i32
    %c8_i32_90 = arith.constant 8 : i32
    %129 = arith.cmpi slt, %127, %c8_i32_90 : i32
    %130 = arith.andi %128, %129 : i1
    %131 = vector.extract_strided_slice %100 {offsets = [10, 0], sizes = [10, 8], strides = [1, 1]} : vector<60x8xf32> to vector<10x8xf32>
    %132 = vector.broadcast %130 : i1 to vector<10x1xi1>
    %133 = arith.andi %106, %132 : vector<10x1xi1>
    %cst_91 = arith.constant 0.000000e+00 : f32
    %134 = vector.shape_cast %133 : vector<10x1xi1> to vector<10x1xi1>
    %135 = vector.broadcast %134 : vector<10x1xi1> to vector<10x8xi1>
    %136 = vector.broadcast %cst_91 : f32 to vector<10x8xf32>
    %137 = arith.select %135, %131, %136 : vector<10x8xi1>, vector<10x8xf32>
    %c11_92 = arith.constant 11 : index
    %c0_93 = arith.constant 0 : index
    %138 = vector.load %arg12[%c11_92, %c0_93] : memref<62x8xf32, #tpu.memory_space<vmem>>, vector<10x8xf32>
    tpu.vector_store %arg12[%c11_92, %c0_93], %137 {strides = array<i32>} : memref<62x8xf32, #tpu.memory_space<vmem>>, vector<10x8xf32>,
    %c4_i32_94 = arith.constant 4 : i32
    %139 = arith.muli %arg1, %c4_i32_94 : i32
    %c1_i32_95 = arith.constant 1 : i32
    %140 = arith.subi %139, %c1_i32_95 : i32
    %c2_i32 = arith.constant 2 : i32
    %141 = arith.addi %140, %c2_i32 : i32
    %c0_i32_96 = arith.constant 0 : i32
    %142 = arith.cmpi sge, %141, %c0_i32_96 : i32
    %c8_i32_97 = arith.constant 8 : i32
    %143 = arith.cmpi slt, %141, %c8_i32_97 : i32
    %144 = arith.andi %142, %143 : i1
    %145 = vector.extract_strided_slice %100 {offsets = [20, 0], sizes = [10, 8], strides = [1, 1]} : vector<60x8xf32> to vector<10x8xf32>
    %146 = vector.broadcast %144 : i1 to vector<10x1xi1>
    %147 = arith.andi %106, %146 : vector<10x1xi1>
    %cst_98 = arith.constant 0.000000e+00 : f32
    %148 = vector.shape_cast %147 : vector<10x1xi1> to vector<10x1xi1>
    %149 = vector.broadcast %148 : vector<10x1xi1> to vector<10x8xi1>
    %150 = vector.broadcast %cst_98 : f32 to vector<10x8xf32>
    %151 = arith.select %149, %145, %150 : vector<10x8xi1>, vector<10x8xf32>
    %c21_99 = arith.constant 21 : index
    %c0_100 = arith.constant 0 : index
    %152 = vector.load %arg12[%c21_99, %c0_100] : memref<62x8xf32, #tpu.memory_space<vmem>>, vector<10x8xf32>
    tpu.vector_store %arg12[%c21_99, %c0_100], %151 {strides = array<i32>} : memref<62x8xf32, #tpu.memory_space<vmem>>, vector<10x8xf32>,
    %c4_i32_101 = arith.constant 4 : i32
    %153 = arith.muli %arg1, %c4_i32_101 : i32
    %c1_i32_102 = arith.constant 1 : i32
    %154 = arith.subi %153, %c1_i32_102 : i32
    %c3_i32 = arith.constant 3 : i32
    %155 = arith.addi %154, %c3_i32 : i32
    %c0_i32_103 = arith.constant 0 : i32
    %156 = arith.cmpi sge, %155, %c0_i32_103 : i32
    %c8_i32_104 = arith.constant 8 : i32
    %157 = arith.cmpi slt, %155, %c8_i32_104 : i32
    %158 = arith.andi %156, %157 : i1
    %159 = vector.extract_strided_slice %100 {offsets = [30, 0], sizes = [10, 8], strides = [1, 1]} : vector<60x8xf32> to vector<10x8xf32>
    %160 = vector.broadcast %158 : i1 to vector<10x1xi1>
    %161 = arith.andi %106, %160 : vector<10x1xi1>
    %cst_105 = arith.constant 0.000000e+00 : f32
    %162 = vector.shape_cast %161 : vector<10x1xi1> to vector<10x1xi1>
    %163 = vector.broadcast %162 : vector<10x1xi1> to vector<10x8xi1>
    %164 = vector.broadcast %cst_105 : f32 to vector<10x8xf32>
    %165 = arith.select %163, %159, %164 : vector<10x8xi1>, vector<10x8xf32>
    %c31_106 = arith.constant 31 : index
    %c0_107 = arith.constant 0 : index
    %166 = vector.load %arg12[%c31_106, %c0_107] : memref<62x8xf32, #tpu.memory_space<vmem>>, vector<10x8xf32>
    tpu.vector_store %arg12[%c31_106, %c0_107], %165 {strides = array<i32>} : memref<62x8xf32, #tpu.memory_space<vmem>>, vector<10x8xf32>,
    %c4_i32_108 = arith.constant 4 : i32
    %167 = arith.muli %arg1, %c4_i32_108 : i32
    %c1_i32_109 = arith.constant 1 : i32
    %168 = arith.subi %167, %c1_i32_109 : i32
    %c4_i32_110 = arith.constant 4 : i32
    %169 = arith.addi %168, %c4_i32_110 : i32
    %c0_i32_111 = arith.constant 0 : i32
    %170 = arith.cmpi sge, %169, %c0_i32_111 : i32
    %c8_i32_112 = arith.constant 8 : i32
    %171 = arith.cmpi slt, %169, %c8_i32_112 : i32
    %172 = arith.andi %170, %171 : i1
    %173 = vector.extract_strided_slice %100 {offsets = [40, 0], sizes = [10, 8], strides = [1, 1]} : vector<60x8xf32> to vector<10x8xf32>
    %174 = vector.broadcast %172 : i1 to vector<10x1xi1>
    %175 = arith.andi %106, %174 : vector<10x1xi1>
    %cst_113 = arith.constant 0.000000e+00 : f32
    %176 = vector.shape_cast %175 : vector<10x1xi1> to vector<10x1xi1>
    %177 = vector.broadcast %176 : vector<10x1xi1> to vector<10x8xi1>
    %178 = vector.broadcast %cst_113 : f32 to vector<10x8xf32>
    %179 = arith.select %177, %173, %178 : vector<10x8xi1>, vector<10x8xf32>
    %c41_114 = arith.constant 41 : index
    %c0_115 = arith.constant 0 : index
    %180 = vector.load %arg12[%c41_114, %c0_115] : memref<62x8xf32, #tpu.memory_space<vmem>>, vector<10x8xf32>
    tpu.vector_store %arg12[%c41_114, %c0_115], %179 {strides = array<i32>} : memref<62x8xf32, #tpu.memory_space<vmem>>, vector<10x8xf32>,
    %c4_i32_116 = arith.constant 4 : i32
    %181 = arith.muli %arg1, %c4_i32_116 : i32
    %c1_i32_117 = arith.constant 1 : i32
    %182 = arith.subi %181, %c1_i32_117 : i32
    %c5_i32 = arith.constant 5 : i32
    %183 = arith.addi %182, %c5_i32 : i32
    %c0_i32_118 = arith.constant 0 : i32
    %184 = arith.cmpi sge, %183, %c0_i32_118 : i32
    %c8_i32_119 = arith.constant 8 : i32
    %185 = arith.cmpi slt, %183, %c8_i32_119 : i32
    %186 = arith.andi %184, %185 : i1
    %187 = vector.extract_strided_slice %100 {offsets = [50, 0], sizes = [10, 8], strides = [1, 1]} : vector<60x8xf32> to vector<10x8xf32>
    %188 = vector.broadcast %186 : i1 to vector<10x1xi1>
    %189 = arith.andi %106, %188 : vector<10x1xi1>
    %cst_120 = arith.constant 0.000000e+00 : f32
    %190 = vector.shape_cast %189 : vector<10x1xi1> to vector<10x1xi1>
    %191 = vector.broadcast %190 : vector<10x1xi1> to vector<10x8xi1>
    %192 = vector.broadcast %cst_120 : f32 to vector<10x8xf32>
    %193 = arith.select %191, %187, %192 : vector<10x8xi1>, vector<10x8xf32>
    %c51_121 = arith.constant 51 : index
    %c0_122 = arith.constant 0 : index
    %194 = vector.load %arg12[%c51_121, %c0_122] : memref<62x8xf32, #tpu.memory_space<vmem>>, vector<10x8xf32>
    tpu.vector_store %arg12[%c51_121, %c0_122], %193 {strides = array<i32>} : memref<62x8xf32, #tpu.memory_space<vmem>>, vector<10x8xf32>,
    %cst_123 = arith.constant 0.000000e+00 : f32
    %195 = vector.broadcast %cst_123 : f32 to vector<40x8xf32>
    %c0_124 = arith.constant 0 : index
    %c0_125 = arith.constant 0 : index
    %196 = vector.load %arg12[%c0_124, %c0_125] : memref<62x8xf32, #tpu.memory_space<vmem>>, vector<40x8xf32>
    %c0_126 = arith.constant 0 : index
    %c0_127 = arith.constant 0 : index
    %c0_128 = arith.constant 0 : index
    %197 = vector.load %arg8[%c0_126, %c0_127, %c0_128] : memref<9x8x8xf32, #tpu.memory_space<vmem>>, vector<1x8x8xf32>
    %198 = vector.shape_cast %197 : vector<1x8x8xf32> to vector<8x8xf32>
    %cst_129 = arith.constant dense<0.000000e+00> : vector<40x8xf32>
    %199 = tpu.matmul %196, %198, %cst_129 {dimension_numbers = #tpu.dot_dimension_numbers<[1], [0], [0], [1], [0, 0, 1, 1], [], []>} : vector<40x8xf32>, vector<8x8xf32>, vector<40x8xf32> -> vector<40x8xf32>
    %200 = arith.addf %195, %199 : vector<40x8xf32>
    %c1_130 = arith.constant 1 : index
    %c0_131 = arith.constant 0 : index
    %201 = vector.load %arg12[%c1_130, %c0_131] : memref<62x8xf32, #tpu.memory_space<vmem>>, vector<40x8xf32>
    %c1_132 = arith.constant 1 : index
    %c0_133 = arith.constant 0 : index
    %c0_134 = arith.constant 0 : index
    %202 = vector.load %arg8[%c1_132, %c0_133, %c0_134] : memref<9x8x8xf32, #tpu.memory_space<vmem>>, vector<1x8x8xf32>
    %203 = vector.shape_cast %202 : vector<1x8x8xf32> to vector<8x8xf32>
    %cst_135 = arith.constant dense<0.000000e+00> : vector<40x8xf32>
    %204 = tpu.matmul %201, %203, %cst_135 {dimension_numbers = #tpu.dot_dimension_numbers<[1], [0], [0], [1], [0, 0, 1, 1], [], []>} : vector<40x8xf32>, vector<8x8xf32>, vector<40x8xf32> -> vector<40x8xf32>
    %205 = arith.addf %200, %204 : vector<40x8xf32>
    %c2_136 = arith.constant 2 : index
    %c0_137 = arith.constant 0 : index
    %206 = vector.load %arg12[%c2_136, %c0_137] : memref<62x8xf32, #tpu.memory_space<vmem>>, vector<40x8xf32>
    %c2_138 = arith.constant 2 : index
    %c0_139 = arith.constant 0 : index
    %c0_140 = arith.constant 0 : index
    %207 = vector.load %arg8[%c2_138, %c0_139, %c0_140] : memref<9x8x8xf32, #tpu.memory_space<vmem>>, vector<1x8x8xf32>
    %208 = vector.shape_cast %207 : vector<1x8x8xf32> to vector<8x8xf32>
    %cst_141 = arith.constant dense<0.000000e+00> : vector<40x8xf32>
    %209 = tpu.matmul %206, %208, %cst_141 {dimension_numbers = #tpu.dot_dimension_numbers<[1], [0], [0], [1], [0, 0, 1, 1], [], []>} : vector<40x8xf32>, vector<8x8xf32>, vector<40x8xf32> -> vector<40x8xf32>
    %210 = arith.addf %205, %209 : vector<40x8xf32>
    %c10_142 = arith.constant 10 : index
    %c0_143 = arith.constant 0 : index
    %211 = vector.load %arg12[%c10_142, %c0_143] : memref<62x8xf32, #tpu.memory_space<vmem>>, vector<40x8xf32>
    %c3_144 = arith.constant 3 : index
    %c0_145 = arith.constant 0 : index
    %c0_146 = arith.constant 0 : index
    %212 = vector.load %arg8[%c3_144, %c0_145, %c0_146] : memref<9x8x8xf32, #tpu.memory_space<vmem>>, vector<1x8x8xf32>
    %213 = vector.shape_cast %212 : vector<1x8x8xf32> to vector<8x8xf32>
    %cst_147 = arith.constant dense<0.000000e+00> : vector<40x8xf32>
    %214 = tpu.matmul %211, %213, %cst_147 {dimension_numbers = #tpu.dot_dimension_numbers<[1], [0], [0], [1], [0, 0, 1, 1], [], []>} : vector<40x8xf32>, vector<8x8xf32>, vector<40x8xf32> -> vector<40x8xf32>
    %215 = arith.addf %210, %214 : vector<40x8xf32>
    %c11_148 = arith.constant 11 : index
    %c0_149 = arith.constant 0 : index
    %216 = vector.load %arg12[%c11_148, %c0_149] : memref<62x8xf32, #tpu.memory_space<vmem>>, vector<40x8xf32>
    %c4_150 = arith.constant 4 : index
    %c0_151 = arith.constant 0 : index
    %c0_152 = arith.constant 0 : index
    %217 = vector.load %arg8[%c4_150, %c0_151, %c0_152] : memref<9x8x8xf32, #tpu.memory_space<vmem>>, vector<1x8x8xf32>
    %218 = vector.shape_cast %217 : vector<1x8x8xf32> to vector<8x8xf32>
    %cst_153 = arith.constant dense<0.000000e+00> : vector<40x8xf32>
    %219 = tpu.matmul %216, %218, %cst_153 {dimension_numbers = #tpu.dot_dimension_numbers<[1], [0], [0], [1], [0, 0, 1, 1], [], []>} : vector<40x8xf32>, vector<8x8xf32>, vector<40x8xf32> -> vector<40x8xf32>
    %220 = arith.addf %215, %219 : vector<40x8xf32>
    %c12_154 = arith.constant 12 : index
    %c0_155 = arith.constant 0 : index
    %221 = vector.load %arg12[%c12_154, %c0_155] : memref<62x8xf32, #tpu.memory_space<vmem>>, vector<40x8xf32>
    %c5_156 = arith.constant 5 : index
    %c0_157 = arith.constant 0 : index
    %c0_158 = arith.constant 0 : index
    %222 = vector.load %arg8[%c5_156, %c0_157, %c0_158] : memref<9x8x8xf32, #tpu.memory_space<vmem>>, vector<1x8x8xf32>
    %223 = vector.shape_cast %222 : vector<1x8x8xf32> to vector<8x8xf32>
    %cst_159 = arith.constant dense<0.000000e+00> : vector<40x8xf32>
    %224 = tpu.matmul %221, %223, %cst_159 {dimension_numbers = #tpu.dot_dimension_numbers<[1], [0], [0], [1], [0, 0, 1, 1], [], []>} : vector<40x8xf32>, vector<8x8xf32>, vector<40x8xf32> -> vector<40x8xf32>
    %225 = arith.addf %220, %224 : vector<40x8xf32>
    %c20_160 = arith.constant 20 : index
    %c0_161 = arith.constant 0 : index
    %226 = vector.load %arg12[%c20_160, %c0_161] : memref<62x8xf32, #tpu.memory_space<vmem>>, vector<40x8xf32>
    %c6_162 = arith.constant 6 : index
    %c0_163 = arith.constant 0 : index
    %c0_164 = arith.constant 0 : index
    %227 = vector.load %arg8[%c6_162, %c0_163, %c0_164] : memref<9x8x8xf32, #tpu.memory_space<vmem>>, vector<1x8x8xf32>
    %228 = vector.shape_cast %227 : vector<1x8x8xf32> to vector<8x8xf32>
    %cst_165 = arith.constant dense<0.000000e+00> : vector<40x8xf32>
    %229 = tpu.matmul %226, %228, %cst_165 {dimension_numbers = #tpu.dot_dimension_numbers<[1], [0], [0], [1], [0, 0, 1, 1], [], []>} : vector<40x8xf32>, vector<8x8xf32>, vector<40x8xf32> -> vector<40x8xf32>
    %230 = arith.addf %225, %229 : vector<40x8xf32>
    %c21_166 = arith.constant 21 : index
    %c0_167 = arith.constant 0 : index
    %231 = vector.load %arg12[%c21_166, %c0_167] : memref<62x8xf32, #tpu.memory_space<vmem>>, vector<40x8xf32>
    %c7_168 = arith.constant 7 : index
    %c0_169 = arith.constant 0 : index
    %c0_170 = arith.constant 0 : index
    %232 = vector.load %arg8[%c7_168, %c0_169, %c0_170] : memref<9x8x8xf32, #tpu.memory_space<vmem>>, vector<1x8x8xf32>
    %233 = vector.shape_cast %232 : vector<1x8x8xf32> to vector<8x8xf32>
    %cst_171 = arith.constant dense<0.000000e+00> : vector<40x8xf32>
    %234 = tpu.matmul %231, %233, %cst_171 {dimension_numbers = #tpu.dot_dimension_numbers<[1], [0], [0], [1], [0, 0, 1, 1], [], []>} : vector<40x8xf32>, vector<8x8xf32>, vector<40x8xf32> -> vector<40x8xf32>
    %235 = arith.addf %230, %234 : vector<40x8xf32>
    %c22_172 = arith.constant 22 : index
    %c0_173 = arith.constant 0 : index
    %236 = vector.load %arg12[%c22_172, %c0_173] : memref<62x8xf32, #tpu.memory_space<vmem>>, vector<40x8xf32>
    %c8_174 = arith.constant 8 : index
    %c0_175 = arith.constant 0 : index
    %c0_176 = arith.constant 0 : index
    %237 = vector.load %arg8[%c8_174, %c0_175, %c0_176] : memref<9x8x8xf32, #tpu.memory_space<vmem>>, vector<1x8x8xf32>
    %238 = vector.shape_cast %237 : vector<1x8x8xf32> to vector<8x8xf32>
    %cst_177 = arith.constant dense<0.000000e+00> : vector<40x8xf32>
    %239 = tpu.matmul %236, %238, %cst_177 {dimension_numbers = #tpu.dot_dimension_numbers<[1], [0], [0], [1], [0, 0, 1, 1], [], []>} : vector<40x8xf32>, vector<8x8xf32>, vector<40x8xf32> -> vector<40x8xf32>
    %240 = arith.addf %235, %239 : vector<40x8xf32>
    %c0_178 = arith.constant 0 : index
    %c0_179 = arith.constant 0 : index
    %241 = vector.load %arg9[%c0_178, %c0_179] : memref<1x8xf32, #tpu.memory_space<vmem>>, vector<1x8xf32>
    %242 = vector.broadcast %241 : vector<1x8xf32> to vector<40x8xf32>
    %243 = arith.addf %240, %242 : vector<40x8xf32>
    %cst_180 = arith.constant 0.000000e+00 : f32
    %244 = vector.broadcast %cst_180 : f32 to vector<40x8xf32>
    %245 = arith.maximumf %243, %244 : vector<40x8xf32>
    %246 = vector.extract_strided_slice %245 {offsets = [1, 0], sizes = [8, 8], strides = [1, 1]} : vector<40x8xf32> to vector<8x8xf32>
    %c0_181 = arith.constant 0 : index
    %c0_182 = arith.constant 0 : index
    %c0_183 = arith.constant 0 : index
    %c0_184 = arith.constant 0 : index
    %247 = vector.load %arg10[%c0_181, %c0_182, %c0_183, %c0_184] : memref<1x4x8x8xf32, #tpu.memory_space<vmem>>, vector<1x1x8x8xf32>
    %248 = vector.shape_cast %247 : vector<1x1x8x8xf32> to vector<8x8xf32>
    %249 = vector.shape_cast %246 : vector<8x8xf32> to vector<1x1x8x8xf32>
    tpu.vector_store %arg10[%c0_181, %c0_182, %c0_183, %c0_184], %249 {strides = array<i32>} : memref<1x4x8x8xf32, #tpu.memory_space<vmem>>, vector<1x1x8x8xf32>,
    %250 = vector.extract_strided_slice %245 {offsets = [11, 0], sizes = [8, 8], strides = [1, 1]} : vector<40x8xf32> to vector<8x8xf32>
    %c0_185 = arith.constant 0 : index
    %c1_186 = arith.constant 1 : index
    %c0_187 = arith.constant 0 : index
    %c0_188 = arith.constant 0 : index
    %251 = vector.load %arg10[%c0_185, %c1_186, %c0_187, %c0_188] : memref<1x4x8x8xf32, #tpu.memory_space<vmem>>, vector<1x1x8x8xf32>
    %252 = vector.shape_cast %251 : vector<1x1x8x8xf32> to vector<8x8xf32>
    %253 = vector.shape_cast %250 : vector<8x8xf32> to vector<1x1x8x8xf32>
    tpu.vector_store %arg10[%c0_185, %c1_186, %c0_187, %c0_188], %253 {strides = array<i32>} : memref<1x4x8x8xf32, #tpu.memory_space<vmem>>, vector<1x1x8x8xf32>,
    %254 = vector.extract_strided_slice %245 {offsets = [21, 0], sizes = [8, 8], strides = [1, 1]} : vector<40x8xf32> to vector<8x8xf32>
    %c0_189 = arith.constant 0 : index
    %c2_190 = arith.constant 2 : index
    %c0_191 = arith.constant 0 : index
    %c0_192 = arith.constant 0 : index
    %255 = vector.load %arg10[%c0_189, %c2_190, %c0_191, %c0_192] : memref<1x4x8x8xf32, #tpu.memory_space<vmem>>, vector<1x1x8x8xf32>
    %256 = vector.shape_cast %255 : vector<1x1x8x8xf32> to vector<8x8xf32>
    %257 = vector.shape_cast %254 : vector<8x8xf32> to vector<1x1x8x8xf32>
    tpu.vector_store %arg10[%c0_189, %c2_190, %c0_191, %c0_192], %257 {strides = array<i32>} : memref<1x4x8x8xf32, #tpu.memory_space<vmem>>, vector<1x1x8x8xf32>,
    %258 = vector.extract_strided_slice %245 {offsets = [31, 0], sizes = [8, 8], strides = [1, 1]} : vector<40x8xf32> to vector<8x8xf32>
    %c0_193 = arith.constant 0 : index
    %c3_194 = arith.constant 3 : index
    %c0_195 = arith.constant 0 : index
    %c0_196 = arith.constant 0 : index
    %259 = vector.load %arg10[%c0_193, %c3_194, %c0_195, %c0_196] : memref<1x4x8x8xf32, #tpu.memory_space<vmem>>, vector<1x1x8x8xf32>
    %260 = vector.shape_cast %259 : vector<1x1x8x8xf32> to vector<8x8xf32>
    %261 = vector.shape_cast %258 : vector<8x8xf32> to vector<1x1x8x8xf32>
    tpu.vector_store %arg10[%c0_193, %c3_194, %c0_195, %c0_196], %261 {strides = array<i32>} : memref<1x4x8x8xf32, #tpu.memory_space<vmem>>, vector<1x1x8x8xf32>,
    return
  }
  func.func @transform_0(%arg0: i32, %arg1: i32) -> (i32, i32, i32, i32) {
    %c0_i32 = arith.constant 0 : i32
    %c0_i32_0 = arith.constant 0 : i32
    %c0_i32_1 = arith.constant 0 : i32
    return %arg0, %arg1, %c0_i32, %c0_i32_0 : i32, i32, i32, i32
  }
  func.func @transform_1(%arg0: i32, %arg1: i32) -> (i32, i32, i32, i32) {
    %c1_i32 = arith.constant 1 : i32
    %0 = arith.addi %arg1, %c1_i32 : i32
    %c0_i32 = arith.constant 0 : i32
    %c0_i32_0 = arith.constant 0 : i32
    %c0_i32_1 = arith.constant 0 : i32
    return %arg0, %0, %c0_i32, %c0_i32_0 : i32, i32, i32, i32
  }
  func.func @transform_2(%arg0: i32, %arg1: i32) -> (i32, i32, i32, i32) {
    %c0_i32 = arith.constant 0 : i32
    %c0_i32_0 = arith.constant 0 : i32
    %c0_i32_1 = arith.constant 0 : i32
    return %arg0, %arg1, %c0_i32, %c0_i32_0 : i32, i32, i32, i32
  }
  func.func @transform_3(%arg0: i32, %arg1: i32) -> (i32, i32, i32, i32) {
    %c1_i32 = arith.constant 1 : i32
    %0 = arith.addi %arg1, %c1_i32 : i32
    %c0_i32 = arith.constant 0 : i32
    %c0_i32_0 = arith.constant 0 : i32
    %c0_i32_1 = arith.constant 0 : i32
    return %arg0, %0, %c0_i32, %c0_i32_0 : i32, i32, i32, i32
  }
  func.func @transform_4(%arg0: i32, %arg1: i32) -> (i32, i32, i32) {
    %c0_i32 = arith.constant 0 : i32
    %c0_i32_0 = arith.constant 0 : i32
    %c0_i32_1 = arith.constant 0 : i32
    %c0_i32_2 = arith.constant 0 : i32
    return %c0_i32, %c0_i32_0, %c0_i32_1 : i32, i32, i32
  }
  func.func @transform_5(%arg0: i32, %arg1: i32) -> (i32, i32) {
    %c0_i32 = arith.constant 0 : i32
    %c0_i32_0 = arith.constant 0 : i32
    %c0_i32_1 = arith.constant 0 : i32
    return %c0_i32, %c0_i32_0 : i32, i32
  }
  func.func @transform_6(%arg0: i32, %arg1: i32) -> (i32, i32, i32) {
    %c0_i32 = arith.constant 0 : i32
    %c0_i32_0 = arith.constant 0 : i32
    %c0_i32_1 = arith.constant 0 : i32
    %c0_i32_2 = arith.constant 0 : i32
    return %c0_i32, %c0_i32_0, %c0_i32_1 : i32, i32, i32
  }
  func.func @transform_7(%arg0: i32, %arg1: i32) -> (i32, i32) {
    %c0_i32 = arith.constant 0 : i32
    %c0_i32_0 = arith.constant 0 : i32
    %c0_i32_1 = arith.constant 0 : i32
    return %c0_i32, %c0_i32_0 : i32, i32
  }
  func.func @transform_8(%arg0: i32, %arg1: i32) -> (i32, i32, i32, i32) {
    %c0_i32 = arith.constant 0 : i32
    %c0_i32_0 = arith.constant 0 : i32
    %c0_i32_1 = arith.constant 0 : i32
    return %arg0, %arg1, %c0_i32, %c0_i32_0 : i32, i32, i32, i32
  }
}

</mosaic_0001>

<llo_original>
// kernel: down_forward.1
$region0: #{down_forward.1}
  #allocation0 [shape = 'u32[]', space=smem, size = 0x4, offset = 0x4, fixed_abs, tag = 'smem constant byte address 0x4 - core index']
  #allocation1 [shape = 'u32[72,128]{1,0:T(1,128)}', space=vmem, size = 0x9000, scoped, tag = 'internal scratch']
  #allocation2 [shape = 'f32[82,4]{1,0:T(8,128)}', space=vmem, size = 0xb000, scoped, tag = 'scratch operand']
  #allocation3 [shape = 'f32[62,8]{1,0:T(8,128)}', space=vmem, size = 0x8000, scoped, tag = 'scratch operand']
  %s0 = inlined_call_operand.vmem [shape: f32[2,24,10,4], index: 0, kind: input, shape index: {}, may-alias: {0,1}]
  %s1 = inlined_call_operand.vmem [shape: f32[2,24,10,4], index: 1, kind: input, shape index: {}, may-alias: {0,1}]
  %s2 = inlined_call_operand.vmem [shape: f32[2,24,10,4], index: 2, kind: input, shape index: {}, may-alias: {2,3}]
  %s3 = inlined_call_operand.vmem [shape: f32[2,24,10,4], index: 3, kind: input, shape index: {}, may-alias: {2,3}]
  %s4 = inlined_call_operand.vmem [shape: f32[9,4,8], index: 4, kind: input, shape index: {}]
  %s5 = inlined_call_operand.vmem [shape: f32[1,8], index: 5, kind: input, shape index: {}]
  %s6 = inlined_call_operand.vmem [shape: f32[9,8,8], index: 6, kind: input, shape index: {}]
  %s7 = inlined_call_operand.vmem [shape: f32[1,8], index: 7, kind: input, shape index: {}]
  %s8 = inlined_call_operand.vmem [shape: f32[2,8,8,8], index: 8, kind: output, shape index: {}]
  %s9 = sld [smem:[#allocation0]]
  $region65: #{down_forward.1} parent=0
    _
  %s11 = ssub.s32 1, %s9
  %s12 = scalar_select 0, %s11, %s9
  loop: start=0, step=1, limit=6
  $region2: #{down_forward.1} parent=0 // loop_pre_header
    _
  $region3: #{down_forward.1} parent=0 // loop_header
    %s14 = sphi 0, %s18
    %p15 = scmp.ge.s32.totalorder %s14, 6
    %s21 = sphi 0, %s33
    %s22 = sphi 0, %s29
    %s23 = sphi 0, %s21
    %s24 = sphi 0, %s22
    %s25 = sphi 0, %s23
    %s26 = sphi 0, %s24
    %s38 = sphi 0, %s40
    %s41 = sphi 0, %s38
    %s42 = sphi 0, %s41
    %s58 = sphi 0, %s42
    %s68 = sphi 0, %s70
    %s71 = sphi 0, %s68
    %s72 = sphi 0, %s71
    %s88 = sphi 0, %s72
    %s96 = sphi 0, %s98
    %s99 = sphi 0, %s96
    %s100 = sphi 0, %s99
    %s116 = sphi 0, %s100
    %s126 = sphi 0, %s128
    %s129 = sphi 0, %s126
    %s130 = sphi 0, %s129
    %s146 = sphi 0, %s130
    %s150 = sphi 0, %s150
    %s152 = sphi 0, %s150
    %s153 = sphi 0, %s152
    %s167 = sphi 0, %s153
    %s171 = sphi 0, %s171
    %s173 = sphi 0, %s171
    %s174 = sphi 0, %s173
    %s188 = sphi 0, %s174
    %s192 = sphi 0, %s192
    %s194 = sphi 0, %s192
    %s195 = sphi 0, %s194
    %s209 = sphi 0, %s195
    %s213 = sphi 0, %s213
    %s215 = sphi 0, %s213
    %s216 = sphi 0, %s215
    %s230 = sphi 0, %s216
    %s238 = sphi 0, %s240
    %s241 = sphi 0, %s238
    %s242 = sphi 0, %s241
    %s258 = sphi 0, %s242
  $region4: #{down_forward.1} parent=0 // loop_header_branch
    %17 = sbr.rel (%p15) target = $region8
  $region5: #{down_forward.1} parent=0 // loop_body
    %s19 = ssub.s32 %s14, 1
    %s20 = ssub.s32 %s14, 2
    %s27 = sadd.s32 1, %s22
    %p28 = scmp.ge.s32.totalorder %s27, 2
    %s29 = scalar_select %p28, 0, %s27
    %s30 = sadd.s32 1, %s21
    %s31 = scalar_select %p28, %s30, %s21
    %p32 = scmp.ge.s32.totalorder %s31, 2
    %s33 = scalar_select %p32, 0, %s31
    %s34 = ssub.s32 %s21, %s33
    %s35 = ssub.s32 %s22, %s29
    %s36 = sor.u32 %s34, %s35
    %p37 = scmp.eq.s32.totalorder %s36, 0
    %s39 = sadd.s32 %s38, 1
    %s40 = scalar_select %p37, %s38, %s39
    %p43 = pneg %p37
    %p44 = scmp.eq.s32.totalorder %s14, 3
    %p45 = por %p43, %p44
    %p46 = scmp.ne.s32.totalorder %s38, %s41
    %p47 = scmp.eq.s32.totalorder %s14, 0
    %p48 = por %p46, %p47
    %p49 = scmp.ne.s32.totalorder %s38, %s41
    %p50 = scmp.eq.s32.totalorder %s19, 3
    %p51 = por %p49, %p50
    %p52 = scmp.ne.s32.totalorder %s41, %s42
    %p53 = scmp.eq.s32.totalorder %s19, 0
    %p54 = por %p52, %p53
    %p55 = scmp.ne.s32.totalorder %s41, %s42
    %p56 = scmp.eq.s32.totalorder %s20, 3
    %p57 = por %p55, %p56
    %p59 = scmp.ne.s32.totalorder %s42, %s58
    %p60 = scmp.eq.s32.totalorder %s20, 0
    %p61 = por %p59, %p60
    %s62 = sadd.s32 %s22, 1
    %s63 = sadd.s32 %s29, 1
    %s64 = ssub.s32 %s21, %s33
    %s65 = ssub.s32 %s62, %s63
    %s66 = sor.u32 %s64, %s65
    %p67 = scmp.eq.s32.totalorder %s66, 0
    %s69 = sadd.s32 %s68, 1
    %s70 = scalar_select %p67, %s68, %s69
    %p73 = pneg %p67
    %p74 = scmp.eq.s32.totalorder %s14, 3
    %p75 = por %p73, %p74
    %p76 = scmp.ne.s32.totalorder %s68, %s71
    %p77 = scmp.eq.s32.totalorder %s14, 0
    %p78 = por %p76, %p77
    %p79 = scmp.ne.s32.totalorder %s68, %s71
    %p80 = scmp.eq.s32.totalorder %s19, 3
    %p81 = por %p79, %p80
    %p82 = scmp.ne.s32.totalorder %s71, %s72
    %p83 = scmp.eq.s32.totalorder %s19, 0
    %p84 = por %p82, %p83
    %p85 = scmp.ne.s32.totalorder %s71, %s72
    %p86 = scmp.eq.s32.totalorder %s20, 3
    %p87 = por %p85, %p86
    %p89 = scmp.ne.s32.totalorder %s72, %s88
    %p90 = scmp.eq.s32.totalorder %s20, 0
    %p91 = por %p89, %p90
    %s92 = ssub.s32 %s21, %s33
    %s93 = ssub.s32 %s22, %s29
    %s94 = sor.u32 %s92, %s93
    %p95 = scmp.eq.s32.totalorder %s94, 0
    %s97 = sadd.s32 %s96, 1
    %s98 = scalar_select %p95, %s96, %s97
    %p101 = pneg %p95
    %p102 = scmp.eq.s32.totalorder %s14, 3
    %p103 = por %p101, %p102
    %p104 = scmp.ne.s32.totalorder %s96, %s99
    %p105 = scmp.eq.s32.totalorder %s14, 0
    %p106 = por %p104, %p105
    %p107 = scmp.ne.s32.totalorder %s96, %s99
    %p108 = scmp.eq.s32.totalorder %s19, 3
    %p109 = por %p107, %p108
    %p110 = scmp.ne.s32.totalorder %s99, %s100
    %p111 = scmp.eq.s32.totalorder %s19, 0
    %p112 = por %p110, %p111
    %p113 = scmp.ne.s32.totalorder %s99, %s100
    %p114 = scmp.eq.s32.totalorder %s20, 3
    %p115 = por %p113, %p114
    %p117 = scmp.ne.s32.totalorder %s100, %s116
    %p118 = scmp.eq.s32.totalorder %s20, 0
    %p119 = por %p117, %p118
    %s120 = sadd.s32 %s22, 1
    %s121 = sadd.s32 %s29, 1
    %s122 = ssub.s32 %s21, %s33
    %s123 = ssub.s32 %s120, %s121
    %s124 = sor.u32 %s122, %s123
    %p125 = scmp.eq.s32.totalorder %s124, 0
    %s127 = sadd.s32 %s126, 1
    %s128 = scalar_select %p125, %s126, %s127
    %p131 = pneg %p125
    %p132 = scmp.eq.s32.totalorder %s14, 3
    %p133 = por %p131, %p132
    %p134 = scmp.ne.s32.totalorder %s126, %s129
    %p135 = scmp.eq.s32.totalorder %s14, 0
    %p136 = por %p134, %p135
    %p137 = scmp.ne.s32.totalorder %s126, %s129
    %p138 = scmp.eq.s32.totalorder %s19, 3
    %p139 = por %p137, %p138
    %p140 = scmp.ne.s32.totalorder %s129, %s130
    %p141 = scmp.eq.s32.totalorder %s19, 0
    %p142 = por %p140, %p141
    %p143 = scmp.ne.s32.totalorder %s129, %s130
    %p144 = scmp.eq.s32.totalorder %s20, 3
    %p145 = por %p143, %p144
    %p147 = scmp.ne.s32.totalorder %s130, %s146
    %p148 = scmp.eq.s32.totalorder %s20, 0
    %p149 = por %p147, %p148
    %s151 = sadd.s32 %s150, 1
    %p154 = scmp.eq.s32.totalorder %s14, 3
    %p155 = scmp.ne.s32.totalorder %s150, %s152
    %p156 = scmp.eq.s32.totalorder %s14, 0
    %p157 = por %p155, %p156
    %p158 = scmp.ne.s32.totalorder %s150, %s152
    %p159 = scmp.eq.s32.totalorder %s19, 3
    %p160 = por %p158, %p159
    %p161 = scmp.ne.s32.totalorder %s152, %s153
    %p162 = scmp.eq.s32.totalorder %s19, 0
    %p163 = por %p161, %p162
    %p164 = scmp.ne.s32.totalorder %s152, %s153
    %p165 = scmp.eq.s32.totalorder %s20, 3
    %p166 = por %p164, %p165
    %p168 = scmp.ne.s32.totalorder %s153, %s167
    %p169 = scmp.eq.s32.totalorder %s20, 0
    %p170 = por %p168, %p169
    %s172 = sadd.s32 %s171, 1
    %p175 = scmp.eq.s32.totalorder %s14, 3
    %p176 = scmp.ne.s32.totalorder %s171, %s173
    %p177 = scmp.eq.s32.totalorder %s14, 0
    %p178 = por %p176, %p177
    %p179 = scmp.ne.s32.totalorder %s171, %s173
    %p180 = scmp.eq.s32.totalorder %s19, 3
    %p181 = por %p179, %p180
    %p182 = scmp.ne.s32.totalorder %s173, %s174
    %p183 = scmp.eq.s32.totalorder %s19, 0
    %p184 = por %p182, %p183
    %p185 = scmp.ne.s32.totalorder %s173, %s174
    %p186 = scmp.eq.s32.totalorder %s20, 3
    %p187 = por %p185, %p186
    %p189 = scmp.ne.s32.totalorder %s174, %s188
    %p190 = scmp.eq.s32.totalorder %s20, 0
    %p191 = por %p189, %p190
    %s193 = sadd.s32 %s192, 1
    %p196 = scmp.eq.s32.totalorder %s14, 3
    %p197 = scmp.ne.s32.totalorder %s192, %s194
    %p198 = scmp.eq.s32.totalorder %s14, 0
    %p199 = por %p197, %p198
    %p200 = scmp.ne.s32.totalorder %s192, %s194
    %p201 = scmp.eq.s32.totalorder %s19, 3
    %p202 = por %p200, %p201
    %p203 = scmp.ne.s32.totalorder %s194, %s195
    %p204 = scmp.eq.s32.totalorder %s19, 0
    %p205 = por %p203, %p204
    %p206 = scmp.ne.s32.totalorder %s194, %s195
    %p207 = scmp.eq.s32.totalorder %s20, 3
    %p208 = por %p206, %p207
    %p210 = scmp.ne.s32.totalorder %s195, %s209
    %p211 = scmp.eq.s32.totalorder %s20, 0
    %p212 = por %p210, %p211
    %s214 = sadd.s32 %s213, 1
    %p217 = scmp.eq.s32.totalorder %s14, 3
    %p218 = scmp.ne.s32.totalorder %s213, %s215
    %p219 = scmp.eq.s32.totalorder %s14, 0
    %p220 = por %p218, %p219
    %p221 = scmp.ne.s32.totalorder %s213, %s215
    %p222 = scmp.eq.s32.totalorder %s19, 3
    %p223 = por %p221, %p222
    %p224 = scmp.ne.s32.totalorder %s215, %s216
    %p225 = scmp.eq.s32.totalorder %s19, 0
    %p226 = por %p224, %p225
    %p227 = scmp.ne.s32.totalorder %s215, %s216
    %p228 = scmp.eq.s32.totalorder %s20, 3
    %p229 = por %p227, %p228
    %p231 = scmp.ne.s32.totalorder %s216, %s230
    %p232 = scmp.eq.s32.totalorder %s20, 0
    %p233 = por %p231, %p232
    %s234 = ssub.s32 %s21, %s33
    %s235 = ssub.s32 %s22, %s29
    %s236 = sor.u32 %s234, %s235
    %p237 = scmp.eq.s32.totalorder %s236, 0
    %s239 = sadd.s32 %s238, 1
    %s240 = scalar_select %p237, %s238, %s239
    %p243 = pneg %p237
    %p244 = scmp.eq.s32.totalorder %s14, 3
    %p245 = por %p243, %p244
    %p246 = scmp.ne.s32.totalorder %s238, %s241
    %p247 = scmp.eq.s32.totalorder %s14, 0
    %p248 = por %p246, %p247
    %p249 = scmp.ne.s32.totalorder %s238, %s241
    %p250 = scmp.eq.s32.totalorder %s19, 3
    %p251 = por %p249, %p250
    %p252 = scmp.ne.s32.totalorder %s241, %s242
    %p253 = scmp.eq.s32.totalorder %s19, 0
    %p254 = por %p252, %p253
    %p255 = scmp.ne.s32.totalorder %s241, %s242
    %p256 = scmp.eq.s32.totalorder %s20, 3
    %p257 = por %p255, %p256
    %p259 = scmp.ne.s32.totalorder %s242, %s258
    %p260 = scmp.eq.s32.totalorder %s20, 0
    %p261 = por %p259, %p260
    %p262 = scmp.le.s32.totalorder 1, %s14
    %p263 = scmp.lt.s32.totalorder %s14, 5
    %p264 = pnand %p262, %p263
    %p265 = pneg %p264
    // Predicated region
    $region9: #{down_forward.1} parent=5 // pred_check
      _
    $region10: #{down_forward.1} parent=5 // pred_check_branch
      %267 = sbr.rel (%p264) target = $region12
    $region11: #{down_forward.1} parent=5 // pred_region
      %s268 = ssub.s32 %s14, 1
      // Predicated region
      $region13: #{down_forward.1} parent=11 // pred_check
        %p269 = pneg %p163
      $region14: #{down_forward.1} parent=11 // pred_check_branch
        %271 = sbr.rel (%p269) target = $region16
      $region15: #{down_forward.1} parent=11 // pred_region
        _
      $region16: #{down_forward.1} parent=11 // pred_fallthru
        _
      // Predicated region
      $region17: #{down_forward.1} parent=11 // pred_check
        %p272 = pneg %p184
      $region18: #{down_forward.1} parent=11 // pred_check_branch
        %274 = sbr.rel (%p272) target = $region20
      $region19: #{down_forward.1} parent=11 // pred_region
        _
      $region20: #{down_forward.1} parent=11 // pred_fallthru
        _
      // Predicated region
      $region21: #{down_forward.1} parent=11 // pred_check
        %p275 = pneg %p205
      $region22: #{down_forward.1} parent=11 // pred_check_branch
        %277 = sbr.rel (%p275) target = $region24
      $region23: #{down_forward.1} parent=11 // pred_region
        _
      $region24: #{down_forward.1} parent=11 // pred_fallthru
        _
      // Predicated region
      $region25: #{down_forward.1} parent=11 // pred_check
        %p278 = pneg %p226
      $region26: #{down_forward.1} parent=11 // pred_check_branch
        %280 = sbr.rel (%p278) target = $region28
      $region27: #{down_forward.1} parent=11 // pred_region
        _
      $region28: #{down_forward.1} parent=11 // pred_fallthru
        _
    $region12: #{down_forward.1} parent=5 // pred_fallthru
      _
    %p281 = scmp.lt.s32.totalorder %s14, 4
    // Predicated region
    $region29: #{down_forward.1} parent=5 // pred_check
      %p282 = pneg %p281
    $region30: #{down_forward.1} parent=5 // pred_check_branch
      %284 = sbr.rel (%p282) target = $region32
    $region31: #{down_forward.1} parent=5 // pred_region
      // Predicated region
      $region33: #{down_forward.1} parent=31 // pred_check
        %p285 = pneg %p48
      $region34: #{down_forward.1} parent=31 // pred_check_branch
        %287 = sbr.rel (%p285) target = $region36
      $region35: #{down_forward.1} parent=31 // pred_region
        %s288 = smul.u32 8, %s22
        %p289 = scmp.lt.s32.totalorder %s21, 1
        %s290 = scalar_select %p289, %s21, 1
        %p291 = scmp.lt.s32.totalorder %s288, 23
        %s292 = scalar_select %p291, %s288, 23
        %s293 = smul.addr %s292, 2
        %s294 = smul.addr %s290, 48
        %s295 = sadd.s32 %s293, %s294
        %s296 = smul.addr %s295, 8
        %s297 = scalar_lea.vmem %s0, %s296
        %s298 = smul.u32 8, %s22
      $region36: #{down_forward.1} parent=31 // pred_fallthru
        _
      // Predicated region
      $region37: #{down_forward.1} parent=31 // pred_check
        %p299 = pneg %p78
      $region38: #{down_forward.1} parent=31 // pred_check_branch
        %301 = sbr.rel (%p299) target = $region40
      $region39: #{down_forward.1} parent=31 // pred_region
        %s302 = sadd.s32 %s22, 1
        %s303 = smul.u32 8, %s302
        %p304 = scmp.lt.s32.totalorder %s21, 1
        %s305 = scalar_select %p304, %s21, 1
        %p306 = scmp.lt.s32.totalorder %s303, 23
        %s307 = scalar_select %p306, %s303, 23
        %s308 = smul.addr %s307, 2
        %s309 = smul.addr %s305, 48
        %s310 = sadd.s32 %s308, %s309
        %s311 = smul.addr %s310, 8
        %s312 = scalar_lea.vmem %s1, %s311
        %s313 = sadd.s32 %s22, 1
        %s314 = smul.u32 8, %s313
      $region40: #{down_forward.1} parent=31 // pred_fallthru
        _
      // Predicated region
      $region41: #{down_forward.1} parent=31 // pred_check
        %p315 = pneg %p106
      $region42: #{down_forward.1} parent=31 // pred_check_branch
        %317 = sbr.rel (%p315) target = $region44
      $region43: #{down_forward.1} parent=31 // pred_region
        %s318 = smul.u32 8, %s22
        %p319 = scmp.lt.s32.totalorder %s21, 1
        %s320 = scalar_select %p319, %s21, 1
        %p321 = scmp.lt.s32.totalorder %s318, 23
        %s322 = scalar_select %p321, %s318, 23
        %s323 = smul.addr %s322, 2
        %s324 = smul.addr %s320, 48
        %s325 = sadd.s32 %s323, %s324
        %s326 = smul.addr %s325, 8
        %s327 = scalar_lea.vmem %s2, %s326
        %s328 = smul.u32 8, %s22
      $region44: #{down_forward.1} parent=31 // pred_fallthru
        _
      // Predicated region
      $region45: #{down_forward.1} parent=31 // pred_check
        %p329 = pneg %p136
      $region46: #{down_forward.1} parent=31 // pred_check_branch
        %331 = sbr.rel (%p329) target = $region48
      $region47: #{down_forward.1} parent=31 // pred_region
        %s332 = sadd.s32 %s22, 1
        %s333 = smul.u32 8, %s332
        %p334 = scmp.lt.s32.totalorder %s21, 1
        %s335 = scalar_select %p334, %s21, 1
        %p336 = scmp.lt.s32.totalorder %s333, 23
        %s337 = scalar_select %p336, %s333, 23
        %s338 = smul.addr %s337, 2
        %s339 = smul.addr %s335, 48
        %s340 = sadd.s32 %s338, %s339
        %s341 = smul.addr %s340, 8
        %s342 = scalar_lea.vmem %s3, %s341
        %s343 = sadd.s32 %s22, 1
        %s344 = smul.u32 8, %s343
      $region48: #{down_forward.1} parent=31 // pred_fallthru
        _
    $region32: #{down_forward.1} parent=5 // pred_fallthru
      _
    %p345 = scmp.le.s32.totalorder 1, %s14
    %p346 = scmp.lt.s32.totalorder %s14, 5
    %p347 = pnand %p345, %p346
    %p348 = pneg %p347
    // Predicated region
    $region49: #{down_forward.1} parent=5 // pred_check
      _
    $region50: #{down_forward.1} parent=5 // pred_check_branch
      %350 = sbr.rel (%p347) target = $region52
    $region51: #{down_forward.1} parent=5 // pred_region
      %s351 = ssub.s32 %s14, 1
      %s352 = smul.u32 8, %s24
      %p353 = scmp.lt.s32.totalorder %s23, 1
      %s354 = scalar_select %p353, %s23, 1
      %p355 = scmp.lt.s32.totalorder %s352, 23
      %s356 = scalar_select %p355, %s352, 23
      %s357 = smul.addr %s356, 2
      %s358 = smul.addr %s354, 48
      %s359 = sadd.s32 %s357, %s358
      %s360 = smul.addr %s359, 8
      %s361 = scalar_lea.vmem %s0, %s360
      %p362 = pneg %p54
      %p363 = pneg %p51
      %s364 = sadd.s32 %s24, 1
      %s365 = smul.u32 8, %s364
      %p366 = scmp.lt.s32.totalorder %s23, 1
      %s367 = scalar_select %p366, %s23, 1
      %p368 = scmp.lt.s32.totalorder %s365, 23
      %s369 = scalar_select %p368, %s365, 23
      %s370 = smul.addr %s369, 2
      %s371 = smul.addr %s367, 48
      %s372 = sadd.s32 %s370, %s371
      %s373 = smul.addr %s372, 8
      %s374 = scalar_lea.vmem %s1, %s373
      %p375 = pneg %p84
      %p376 = pneg %p81
      %s377 = smul.u32 8, %s24
      %p378 = scmp.lt.s32.totalorder %s23, 1
      %s379 = scalar_select %p378, %s23, 1
      %p380 = scmp.lt.s32.totalorder %s377, 23
      %s381 = scalar_select %p380, %s377, 23
      %s382 = smul.addr %s381, 2
      %s383 = smul.addr %s379, 48
      %s384 = sadd.s32 %s382, %s383
      %s385 = smul.addr %s384, 8
      %s386 = scalar_lea.vmem %s2, %s385
      %p387 = pneg %p112
      %p388 = pneg %p109
      %s389 = sadd.s32 %s24, 1
      %s390 = smul.u32 8, %s389
      %p391 = scmp.lt.s32.totalorder %s23, 1
      %s392 = scalar_select %p391, %s23, 1
      %p393 = scmp.lt.s32.totalorder %s390, 23
      %s394 = scalar_select %p393, %s390, 23
      %s395 = smul.addr %s394, 2
      %s396 = smul.addr %s392, 48
      %s397 = sadd.s32 %s395, %s396
      %s398 = smul.addr %s397, 8
      %s399 = scalar_lea.vmem %s3, %s398
      %p400 = pneg %p142
      %p401 = pneg %p139
      %p402 = pneg %p163
      %p403 = pneg %p160
      %p404 = pneg %p184
      %p405 = pneg %p181
      %p406 = pneg %p205
      %p407 = pneg %p202
      %p408 = pneg %p226
      %p409 = pneg %p223
      %p410 = pneg %p254
      %p411 = pneg %p251
      %s412 = smul.u32 4, %s24
      %p413 = scmp.lt.s32.totalorder %s23, 1
      %s414 = scalar_select %p413, %s23, 1
      %p415 = scmp.lt.s32.totalorder %s412, 7
      %s416 = scalar_select %p415, %s412, 7
      %s417 = smul.addr %s414, 8
      %s418 = sadd.s32 %s416, %s417
      %s419 = smul.addr %s418, 8
      %s420 = scalar_lea.vmem %s8, %s419
      %s421 = smul.u32 8, %s24
      %p422 = scmp.lt.s32.totalorder %s23, 1
      %s423 = scalar_select %p422, %s23, 1
      %p424 = scmp.lt.s32.totalorder %s421, 23
      %s425 = scalar_select %p424, %s421, 23
      %s426 = smul.addr %s425, 2
      %s427 = smul.addr %s423, 48
      %s428 = sadd.s32 %s426, %s427
      %s429 = smul.addr %s428, 8
      %s430 = scalar_lea.vmem %s0, %s429
      %s431 = smul.u32 8, %s24
      %s432 = sadd.s32 %s24, 1
      %s433 = smul.u32 8, %s432
      %p434 = scmp.lt.s32.totalorder %s23, 1
      %s435 = scalar_select %p434, %s23, 1
      %p436 = scmp.lt.s32.totalorder %s433, 23
      %s437 = scalar_select %p436, %s433, 23
      %s438 = smul.addr %s437, 2
      %s439 = smul.addr %s435, 48
      %s440 = sadd.s32 %s438, %s439
      %s441 = smul.addr %s440, 8
      %s442 = scalar_lea.vmem %s1, %s441
      %s443 = sadd.s32 %s24, 1
      %s444 = smul.u32 8, %s443
      %s445 = smul.u32 8, %s24
      %p446 = scmp.lt.s32.totalorder %s23, 1
      %s447 = scalar_select %p446, %s23, 1
      %p448 = scmp.lt.s32.totalorder %s445, 23
      %s449 = scalar_select %p448, %s445, 23
      %s450 = smul.addr %s449, 2
      %s451 = smul.addr %s447, 48
      %s452 = sadd.s32 %s450, %s451
      %s453 = smul.addr %s452, 8
      %s454 = scalar_lea.vmem %s2, %s453
      %s455 = smul.u32 8, %s24
      %s456 = sadd.s32 %s24, 1
      %s457 = smul.u32 8, %s456
      %p458 = scmp.lt.s32.totalorder %s23, 1
      %s459 = scalar_select %p458, %s23, 1
      %p460 = scmp.lt.s32.totalorder %s457, 23
      %s461 = scalar_select %p460, %s457, 23
      %s462 = smul.addr %s461, 2
      %s463 = smul.addr %s459, 48
      %s464 = sadd.s32 %s462, %s463
      %s465 = smul.addr %s464, 8
      %s466 = scalar_lea.vmem %s3, %s465
      %s467 = sadd.s32 %s24, 1
      %s468 = smul.u32 8, %s467
      %s469 = smul.u32 4, %s24
      %p470 = scmp.lt.s32.totalorder %s23, 1
      %s471 = scalar_select %p470, %s23, 1
      %p472 = scmp.lt.s32.totalorder %s469, 7
      %s473 = scalar_select %p472, %s469, 7
      %s474 = smul.addr %s471, 8
      %s475 = sadd.s32 %s473, %s474
      %s476 = smul.addr %s475, 8
      %s477 = scalar_lea.vmem %s8, %s476
      %s478 = smul.u32 4, %s24
      %v479 = vld [vmem:[%s430] sm:$0xff]
      %v480 = vld [vmem:[%s430 + $0x8] sm:$0x3]
      %v481 = vld [vmem:[%s430 + $0x10] sm:$0xff]
      %v482 = vld [vmem:[%s430 + $0x18] sm:$0x3]
      %v483 = vld [vmem:[%s430 + $0x20] sm:$0xff]
      %v484 = vld [vmem:[%s430 + $0x28] sm:$0x3]
      %v485 = vld [vmem:[%s430 + $0x30] sm:$0xff]
      %v486 = vld [vmem:[%s430 + $0x38] sm:$0x3]
      %v487 = vld [vmem:[%s430 + $0x40] sm:$0xff]
      %v488 = vld [vmem:[%s430 + $0x48] sm:$0x3]
      %v489 = vld [vmem:[%s430 + $0x50] sm:$0xff]
      %v490 = vld [vmem:[%s430 + $0x58] sm:$0x3]
      %v491 = vld [vmem:[%s430 + $0x60] sm:$0xff]
      %v492 = vld [vmem:[%s430 + $0x68] sm:$0x3]
      %v493 = vld [vmem:[%s430 + $0x70] sm:$0xff]
      %v494 = vld [vmem:[%s430 + $0x78] sm:$0x3]
      %v495 = vld [vmem:[%s454] sm:$0xff]
      %v496 = vld [vmem:[%s454 + $0x8] sm:$0x3]
      %v497 = vld [vmem:[%s454 + $0x10] sm:$0xff]
      %v498 = vld [vmem:[%s454 + $0x18] sm:$0x3]
      %v499 = vld [vmem:[%s454 + $0x20] sm:$0xff]
      %v500 = vld [vmem:[%s454 + $0x28] sm:$0x3]
      %v501 = vld [vmem:[%s454 + $0x30] sm:$0xff]
      %v502 = vld [vmem:[%s454 + $0x38] sm:$0x3]
      %v503 = vld [vmem:[%s454 + $0x40] sm:$0xff]
      %v504 = vld [vmem:[%s454 + $0x48] sm:$0x3]
      %v505 = vld [vmem:[%s454 + $0x50] sm:$0xff]
      %v506 = vld [vmem:[%s454 + $0x58] sm:$0x3]
      %v507 = vld [vmem:[%s454 + $0x60] sm:$0xff]
      %v508 = vld [vmem:[%s454 + $0x68] sm:$0x3]
      %v509 = vld [vmem:[%s454 + $0x70] sm:$0xff]
      %v510 = vld [vmem:[%s454 + $0x78] sm:$0x3]
      %v511 = vmax.f32 %v479, %v495
      %v512 = vmax.f32 %v480, %v496
      %v513 = vmax.f32 %v481, %v497
      %v514 = vmax.f32 %v482, %v498
      %v515 = vmax.f32 %v483, %v499
      %v516 = vmax.f32 %v484, %v500
      %v517 = vmax.f32 %v485, %v501
      %v518 = vmax.f32 %v486, %v502
      %v519 = vmax.f32 %v487, %v503
      %v520 = vmax.f32 %v488, %v504
      %v521 = vmax.f32 %v489, %v505
      %v522 = vmax.f32 %v490, %v506
      %v523 = vmax.f32 %v491, %v507
      %v524 = vmax.f32 %v492, %v508
      %v525 = vmax.f32 %v493, %v509
      %v526 = vmax.f32 %v494, %v510
      %v527 = vmax.f32 %v511, %v513
      %v528 = vmax.f32 %v512, %v514
      %v529 = vmax.f32 %v515, %v517
      %v530 = vmax.f32 %v516, %v518
      %v531 = vmax.f32 %v519, %v521
      %v532 = vmax.f32 %v520, %v522
      %v533 = vmax.f32 %v523, %v525
      %v534 = vmax.f32 %v524, %v526
      %v535 = vld [vmem:[%s442] sm:$0xff]
      %v536 = vld [vmem:[%s442 + $0x8] sm:$0x3]
      %v537 = vld [vmem:[%s442 + $0x10] sm:$0xff]
      %v538 = vld [vmem:[%s442 + $0x18] sm:$0x3]
      %v539 = vld [vmem:[%s442 + $0x20] sm:$0xff]
      %v540 = vld [vmem:[%s442 + $0x28] sm:$0x3]
      %v541 = vld [vmem:[%s442 + $0x30] sm:$0xff]
      %v542 = vld [vmem:[%s442 + $0x38] sm:$0x3]
      %v543 = vld [vmem:[%s442 + $0x40] sm:$0xff]
      %v544 = vld [vmem:[%s442 + $0x48] sm:$0x3]
      %v545 = vld [vmem:[%s442 + $0x50] sm:$0xff]
      %v546 = vld [vmem:[%s442 + $0x58] sm:$0x3]
      %v547 = vld [vmem:[%s442 + $0x60] sm:$0xff]
      %v548 = vld [vmem:[%s442 + $0x68] sm:$0x3]
      %v549 = vld [vmem:[%s442 + $0x70] sm:$0xff]
      %v550 = vld [vmem:[%s442 + $0x78] sm:$0x3]
      %v551 = vld [vmem:[%s466] sm:$0xff]
      %v552 = vld [vmem:[%s466 + $0x8] sm:$0x3]
      %v553 = vld [vmem:[%s466 + $0x10] sm:$0xff]
      %v554 = vld [vmem:[%s466 + $0x18] sm:$0x3]
      %v555 = vld [vmem:[%s466 + $0x20] sm:$0xff]
      %v556 = vld [vmem:[%s466 + $0x28] sm:$0x3]
      %v557 = vld [vmem:[%s466 + $0x30] sm:$0xff]
      %v558 = vld [vmem:[%s466 + $0x38] sm:$0x3]
      %v559 = vld [vmem:[%s466 + $0x40] sm:$0xff]
      %v560 = vld [vmem:[%s466 + $0x48] sm:$0x3]
      %v561 = vld [vmem:[%s466 + $0x50] sm:$0xff]
      %v562 = vld [vmem:[%s466 + $0x58] sm:$0x3]
      %v563 = vld [vmem:[%s466 + $0x60] sm:$0xff]
      %v564 = vld [vmem:[%s466 + $0x68] sm:$0x3]
      %v565 = vld [vmem:[%s466 + $0x70] sm:$0xff]
      %v566 = vld [vmem:[%s466 + $0x78] sm:$0x3]
      %v567 = vmax.f32 %v535, %v551
      %v568 = vmax.f32 %v536, %v552
      %v569 = vmax.f32 %v537, %v553
      %v570 = vmax.f32 %v538, %v554
      %v571 = vmax.f32 %v539, %v555
      %v572 = vmax.f32 %v540, %v556
      %v573 = vmax.f32 %v541, %v557
      %v574 = vmax.f32 %v542, %v558
      %v575 = vmax.f32 %v543, %v559
      %v576 = vmax.f32 %v544, %v560
      %v577 = vmax.f32 %v545, %v561
      %v578 = vmax.f32 %v546, %v562
      %v579 = vmax.f32 %v547, %v563
      %v580 = vmax.f32 %v548, %v564
      %v581 = vmax.f32 %v549, %v565
      %v582 = vmax.f32 %v550, %v566
      %v583 = vmax.f32 %v567, %v569
      %v584 = vmax.f32 %v568, %v570
      %v585 = vmax.f32 %v571, %v573
      %v586 = vmax.f32 %v572, %v574
      %v587 = vmax.f32 %v575, %v577
      %v588 = vmax.f32 %v576, %v578
      %v589 = vmax.f32 %v579, %v581
      %v590 = vmax.f32 %v580, %v582
      %vm591 = vcmask 24576
      %592 = vst.msk [vmem:[#allocation2] sm:$0x1] %vm591, 0.0
      %593 = vst.msk [vmem:[#allocation2 + $0x51] sm:$0x1] %vm591, 0.0
      %vm594 = vcmask 31744
      %595 = vst.msk [vmem:[#allocation2 + $0x1] sm:$0xff] %vm594, %v527
      %vm596 = vcmask 25600
      %597 = vst.msk [vmem:[#allocation2 + $0x9] sm:$0x3] %vm596, %v528
      %598 = vst.msk [vmem:[#allocation2 + $0xb] sm:$0xff] %vm594, %v529
      %599 = vst.msk [vmem:[#allocation2 + $0x13] sm:$0x3] %vm596, %v530
      %600 = vst.msk [vmem:[#allocation2 + $0x15] sm:$0xff] %vm594, %v531
      %601 = vst.msk [vmem:[#allocation2 + $0x1d] sm:$0x3] %vm596, %v532
      %602 = vst.msk [vmem:[#allocation2 + $0x1f] sm:$0xff] %vm594, %v533
      %603 = vst.msk [vmem:[#allocation2 + $0x27] sm:$0x3] %vm596, %v534
      %604 = vst.msk [vmem:[#allocation2 + $0x29] sm:$0xff] %vm594, %v583
      %605 = vst.msk [vmem:[#allocation2 + $0x31] sm:$0x3] %vm596, %v584
      %606 = vst.msk [vmem:[#allocation2 + $0x33] sm:$0xff] %vm594, %v585
      %607 = vst.msk [vmem:[#allocation2 + $0x3b] sm:$0x3] %vm596, %v586
      %608 = vst.msk [vmem:[#allocation2 + $0x3d] sm:$0xff] %vm594, %v587
      %609 = vst.msk [vmem:[#allocation2 + $0x45] sm:$0x3] %vm596, %v588
      %610 = vst.msk [vmem:[#allocation2 + $0x47] sm:$0xff] %vm594, %v589
      %611 = vst.msk [vmem:[#allocation2 + $0x4f] sm:$0x3] %vm596, %v590
      %v612 = vld [vmem:[#allocation2] sm:$0xff]
      %v613 = vld [vmem:[#allocation2 + $0x8] sm:$0xff]
      %v614 = vld [vmem:[#allocation2 + $0x10] sm:$0xff]
      %v615 = vld [vmem:[#allocation2 + $0x18] sm:$0xff]
      %v616 = vld [vmem:[#allocation2 + $0x20] sm:$0xff]
      %v617 = vld [vmem:[#allocation2 + $0x28] sm:$0xff]
      %v618 = vld [vmem:[#allocation2 + $0x30] sm:$0xff]
      %v619 = vld [vmem:[#allocation2 + $0x38] sm:$0xf]
      %v620 = vld [vmem:[%s4] sm:$0xf]
      %v621 = vld [vmem:[#allocation2 + $0x1] sm:$0xff]
      %v622 = vld [vmem:[#allocation2 + $0x9] sm:$0xff]
      %v623 = vld [vmem:[#allocation2 + $0x11] sm:$0xff]
      %v624 = vld [vmem:[#allocation2 + $0x19] sm:$0xff]
      %v625 = vld [vmem:[#allocation2 + $0x21] sm:$0xff]
      %v626 = vld [vmem:[#allocation2 + $0x29] sm:$0xff]
      %v627 = vld [vmem:[#allocation2 + $0x31] sm:$0xff]
      %v628 = vld [vmem:[#allocation2 + $0x39] sm:$0xf]
      %s629 = scalar_lea.vmem %s4, 4
      %v630 = vld [vmem:[%s629] sm:$0xf]
      %v632 = vsel %vm594, %v621, 0
      %v635 = vsel %vm594, %v622, 0
      %v638 = vsel %vm594, %v623, 0
      %v641 = vsel %vm594, %v624, 0
      %v644 = vsel %vm594, %v625, 0
      %v647 = vsel %vm594, %v626, 0
      %v650 = vsel %vm594, %v627, 0
      %v653 = vsel %vm594, %v628, 0
      %vm655 = vcmask 1043456
      %v657 = vsel %vm655, %v630, 0
      %659 = vmatpush.msra.mxu0 0.0
      %660 = vmatpush.msra.mxu0 0.0
      %661 = vmatpush.msra.mxu0 0.0
      %662 = vmatpush.msra.mxu0 0.0
      %663 = vmatpush.msra.mxu0 0.0
      %664 = vmatpush.msra.mxu0 0.0
      %665 = vmatpush.msra.mxu0 0.0
      %666 = vmatpush.msra.mxu0 0.0
      %667 = vmatpush.msra.mxu0 0.0
      %668 = vmatpush.msra.mxu0 0.0
      %669 = vmatpush.msra.mxu0 0.0
      %670 = vmatpush.msra.mxu0 0.0
      %671 = vmatpush.msra.mxu0 0.0
      %672 = vmatpush.msra.mxu0 0.0
      %673 = vmatpush.msra.mxu0 0.0
      %674 = vmatpush.msra.mxu0 %v657
      %675 = vmatmul.f32.gmra.mxu0 %v632
      %v676 = vpop.f32.mrf.mxu0
      %v677 = vadd.f32 0.0, %v676
      %678 = vmatmul.f32.gmra.mxu0 %v635
      %v679 = vpop.f32.mrf.mxu0
      %v680 = vadd.f32 0.0, %v679
      %681 = vmatmul.f32.gmra.mxu0 %v638
      %v682 = vpop.f32.mrf.mxu0
      %v683 = vadd.f32 0.0, %v682
      %684 = vmatmul.f32.gmra.mxu0 %v641
      %v685 = vpop.f32.mrf.mxu0
      %v686 = vadd.f32 0.0, %v685
      %687 = vmatmul.f32.gmra.mxu0 %v644
      %v688 = vpop.f32.mrf.mxu0
      %v689 = vadd.f32 0.0, %v688
      %690 = vmatmul.f32.gmra.mxu0 %v647
      %v691 = vpop.f32.mrf.mxu0
      %v692 = vadd.f32 0.0, %v691
      %693 = vmatmul.f32.gmra.mxu0 %v650
      %v694 = vpop.f32.mrf.mxu0
      %v695 = vadd.f32 0.0, %v694
      %696 = vmatmul.f32.gmra.mxu0 %v653
      %v697 = vpop.f32.mrf.mxu0
      %v698 = vadd.f32 0.0, %v697
      %699 = vdwg.mxu0
      %v701 = vsel %vm594, %v612, 0
      %v704 = vsel %vm594, %v613, 0
      %v707 = vsel %vm594, %v614, 0
      %v710 = vsel %vm594, %v615, 0
      %v713 = vsel %vm594, %v616, 0
      %v716 = vsel %vm594, %v617, 0
      %v719 = vsel %vm594, %v618, 0
      %v722 = vsel %vm594, %v619, 0
      %v725 = vsel %vm655, %v620, 0
      %727 = vmatpush.msra.mxu0 0.0
      %728 = vmatpush.msra.mxu0 0.0
      %729 = vmatpush.msra.mxu0 0.0
      %730 = vmatpush.msra.mxu0 0.0
      %731 = vmatpush.msra.mxu0 0.0
      %732 = vmatpush.msra.mxu0 0.0
      %733 = vmatpush.msra.mxu0 0.0
      %734 = vmatpush.msra.mxu0 0.0
      %735 = vmatpush.msra.mxu0 0.0
      %736 = vmatpush.msra.mxu0 0.0
      %737 = vmatpush.msra.mxu0 0.0
      %738 = vmatpush.msra.mxu0 0.0
      %739 = vmatpush.msra.mxu0 0.0
      %740 = vmatpush.msra.mxu0 0.0
      %741 = vmatpush.msra.mxu0 0.0
      %742 = vmatpush.msra.mxu0 %v725
      %743 = vmatmul.f32.gmra.mxu0 %v701
      %v744 = vpop.f32.mrf.mxu0
      %v745 = vadd.f32 %v677, %v744
      %746 = vmatmul.f32.gmra.mxu0 %v704
      %v747 = vpop.f32.mrf.mxu0
      %v748 = vadd.f32 %v680, %v747
      %749 = vmatmul.f32.gmra.mxu0 %v707
      %v750 = vpop.f32.mrf.mxu0
      %v751 = vadd.f32 %v683, %v750
      %752 = vmatmul.f32.gmra.mxu0 %v710
      %v753 = vpop.f32.mrf.mxu0
      %v754 = vadd.f32 %v686, %v753
      %755 = vmatmul.f32.gmra.mxu0 %v713
      %v756 = vpop.f32.mrf.mxu0
      %v757 = vadd.f32 %v689, %v756
      %758 = vmatmul.f32.gmra.mxu0 %v716
      %v759 = vpop.f32.mrf.mxu0
      %v760 = vadd.f32 %v692, %v759
      %761 = vmatmul.f32.gmra.mxu0 %v719
      %v762 = vpop.f32.mrf.mxu0
      %v763 = vadd.f32 %v695, %v762
      %764 = vmatmul.f32.gmra.mxu0 %v722
      %v765 = vpop.f32.mrf.mxu0
      %v766 = vadd.f32 %v698, %v765
      %767 = vdwg.mxu0
      %v768 = vld [vmem:[#allocation2 + $0x2] sm:$0xff]
      %v769 = vld [vmem:[#allocation2 + $0xa] sm:$0xff]
      %v770 = vld [vmem:[#allocation2 + $0x12] sm:$0xff]
      %v771 = vld [vmem:[#allocation2 + $0x1a] sm:$0xff]
      %v772 = vld [vmem:[#allocation2 + $0x22] sm:$0xff]
      %v773 = vld [vmem:[#allocation2 + $0x2a] sm:$0xff]
      %v774 = vld [vmem:[#allocation2 + $0x32] sm:$0xff]
      %v775 = vld [vmem:[#allocation2 + $0x3a] sm:$0xf]
      %s776 = scalar_lea.vmem %s4, 8
      %v777 = vld [vmem:[%s776] sm:$0xf]
      %v779 = vsel %vm594, %v768, 0
      %v782 = vsel %vm594, %v769, 0
      %v785 = vsel %vm594, %v770, 0
      %v788 = vsel %vm594, %v771, 0
      %v791 = vsel %vm594, %v772, 0
      %v794 = vsel %vm594, %v773, 0
      %v797 = vsel %vm594, %v774, 0
      %v800 = vsel %vm594, %v775, 0
      %v803 = vsel %vm655, %v777, 0
      %805 = vmatpush.msra.mxu0 0.0
      %806 = vmatpush.msra.mxu0 0.0
      %807 = vmatpush.msra.mxu0 0.0
      %808 = vmatpush.msra.mxu0 0.0
      %809 = vmatpush.msra.mxu0 0.0
      %810 = vmatpush.msra.mxu0 0.0
      %811 = vmatpush.msra.mxu0 0.0
      %812 = vmatpush.msra.mxu0 0.0
      %813 = vmatpush.msra.mxu0 0.0
      %814 = vmatpush.msra.mxu0 0.0
      %815 = vmatpush.msra.mxu0 0.0
      %816 = vmatpush.msra.mxu0 0.0
      %817 = vmatpush.msra.mxu0 0.0
      %818 = vmatpush.msra.mxu0 0.0
      %819 = vmatpush.msra.mxu0 0.0
      %820 = vmatpush.msra.mxu0 %v803
      %821 = vmatmul.f32.gmra.mxu0 %v779
      %v822 = vpop.f32.mrf.mxu0
      %v823 = vadd.f32 0.0, %v822
      %824 = vmatmul.f32.gmra.mxu0 %v782
      %v825 = vpop.f32.mrf.mxu0
      %v826 = vadd.f32 0.0, %v825
      %827 = vmatmul.f32.gmra.mxu0 %v785
      %v828 = vpop.f32.mrf.mxu0
      %v829 = vadd.f32 0.0, %v828
      %830 = vmatmul.f32.gmra.mxu0 %v788
      %v831 = vpop.f32.mrf.mxu0
      %v832 = vadd.f32 0.0, %v831
      %833 = vmatmul.f32.gmra.mxu0 %v791
      %v834 = vpop.f32.mrf.mxu0
      %v835 = vadd.f32 0.0, %v834
      %836 = vmatmul.f32.gmra.mxu0 %v794
      %v837 = vpop.f32.mrf.mxu0
      %v838 = vadd.f32 0.0, %v837
      %839 = vmatmul.f32.gmra.mxu0 %v797
      %v840 = vpop.f32.mrf.mxu0
      %v841 = vadd.f32 0.0, %v840
      %842 = vmatmul.f32.gmra.mxu0 %v800
      %v843 = vpop.f32.mrf.mxu0
      %v844 = vadd.f32 0.0, %v843
      %845 = vdwg.mxu0
      %v846 = vadd.f32 %v745, %v823
      %v847 = vadd.f32 %v748, %v826
      %v848 = vadd.f32 %v751, %v829
      %v849 = vadd.f32 %v754, %v832
      %v850 = vadd.f32 %v757, %v835
      %v851 = vadd.f32 %v760, %v838
      %v852 = vadd.f32 %v763, %v841
      %v853 = vadd.f32 %v766, %v844
      %v854 = vld [vmem:[#allocation2 + $0xa] sm:$0xff]
      %v855 = vld [vmem:[#allocation2 + $0x12] sm:$0xff]
      %v856 = vld [vmem:[#allocation2 + $0x1a] sm:$0xff]
      %v857 = vld [vmem:[#allocation2 + $0x22] sm:$0xff]
      %v858 = vld [vmem:[#allocation2 + $0x2a] sm:$0xff]
      %v859 = vld [vmem:[#allocation2 + $0x32] sm:$0xff]
      %v860 = vld [vmem:[#allocation2 + $0x3a] sm:$0xff]
      %v861 = vld [vmem:[#allocation2 + $0x42] sm:$0xf]
      %s862 = scalar_lea.vmem %s4, 12
      %v863 = vld [vmem:[%s862] sm:$0xf]
      %v865 = vsel %vm594, %v854, 0
      %v868 = vsel %vm594, %v855, 0
      %v871 = vsel %vm594, %v856, 0
      %v874 = vsel %vm594, %v857, 0
      %v877 = vsel %vm594, %v858, 0
      %v880 = vsel %vm594, %v859, 0
      %v883 = vsel %vm594, %v860, 0
      %v886 = vsel %vm594, %v861, 0
      %v889 = vsel %vm655, %v863, 0
      %891 = vmatpush.msra.mxu0 0.0
      %892 = vmatpush.msra.mxu0 0.0
      %893 = vmatpush.msra.mxu0 0.0
      %894 = vmatpush.msra.mxu0 0.0
      %895 = vmatpush.msra.mxu0 0.0
      %896 = vmatpush.msra.mxu0 0.0
      %897 = vmatpush.msra.mxu0 0.0
      %898 = vmatpush.msra.mxu0 0.0
      %899 = vmatpush.msra.mxu0 0.0
      %900 = vmatpush.msra.mxu0 0.0
      %901 = vmatpush.msra.mxu0 0.0
      %902 = vmatpush.msra.mxu0 0.0
      %903 = vmatpush.msra.mxu0 0.0
      %904 = vmatpush.msra.mxu0 0.0
      %905 = vmatpush.msra.mxu0 0.0
      %906 = vmatpush.msra.mxu0 %v889
      %907 = vmatmul.f32.gmra.mxu0 %v865
      %v908 = vpop.f32.mrf.mxu0
      %v909 = vadd.f32 0.0, %v908
      %910 = vmatmul.f32.gmra.mxu0 %v868
      %v911 = vpop.f32.mrf.mxu0
      %v912 = vadd.f32 0.0, %v911
      %913 = vmatmul.f32.gmra.mxu0 %v871
      %v914 = vpop.f32.mrf.mxu0
      %v915 = vadd.f32 0.0, %v914
      %916 = vmatmul.f32.gmra.mxu0 %v874
      %v917 = vpop.f32.mrf.mxu0
      %v918 = vadd.f32 0.0, %v917
      %919 = vmatmul.f32.gmra.mxu0 %v877
      %v920 = vpop.f32.mrf.mxu0
      %v921 = vadd.f32 0.0, %v920
      %922 = vmatmul.f32.gmra.mxu0 %v880
      %v923 = vpop.f32.mrf.mxu0
      %v924 = vadd.f32 0.0, %v923
      %925 = vmatmul.f32.gmra.mxu0 %v883
      %v926 = vpop.f32.mrf.mxu0
      %v927 = vadd.f32 0.0, %v926
      %928 = vmatmul.f32.gmra.mxu0 %v886
      %v929 = vpop.f32.mrf.mxu0
      %v930 = vadd.f32 0.0, %v929
      %931 = vdwg.mxu0
      %v932 = vadd.f32 %v846, %v909
      %v933 = vadd.f32 %v847, %v912
      %v934 = vadd.f32 %v848, %v915
      %v935 = vadd.f32 %v849, %v918
      %v936 = vadd.f32 %v850, %v921
      %v937 = vadd.f32 %v851, %v924
      %v938 = vadd.f32 %v852, %v927
      %v939 = vadd.f32 %v853, %v930
      %v940 = vld [vmem:[#allocation2 + $0xb] sm:$0xff]
      %v941 = vld [vmem:[#allocation2 + $0x13] sm:$0xff]
      %v942 = vld [vmem:[#allocation2 + $0x1b] sm:$0xff]
      %v943 = vld [vmem:[#allocation2 + $0x23] sm:$0xff]
      %v944 = vld [vmem:[#allocation2 + $0x2b] sm:$0xff]
      %v945 = vld [vmem:[#allocation2 + $0x33] sm:$0xff]
      %v946 = vld [vmem:[#allocation2 + $0x3b] sm:$0xff]
      %v947 = vld [vmem:[#allocation2 + $0x43] sm:$0xf]
      %s948 = scalar_lea.vmem %s4, 16
      %v949 = vld [vmem:[%s948] sm:$0xf]
      %v951 = vsel %vm594, %v940, 0
      %v954 = vsel %vm594, %v941, 0
      %v957 = vsel %vm594, %v942, 0
      %v960 = vsel %vm594, %v943, 0
      %v963 = vsel %vm594, %v944, 0
      %v966 = vsel %vm594, %v945, 0
      %v969 = vsel %vm594, %v946, 0
      %v972 = vsel %vm594, %v947, 0
      %v975 = vsel %vm655, %v949, 0
      %977 = vmatpush.msra.mxu0 0.0
      %978 = vmatpush.msra.mxu0 0.0
      %979 = vmatpush.msra.mxu0 0.0
      %980 = vmatpush.msra.mxu0 0.0
      %981 = vmatpush.msra.mxu0 0.0
      %982 = vmatpush.msra.mxu0 0.0
      %983 = vmatpush.msra.mxu0 0.0
      %984 = vmatpush.msra.mxu0 0.0
      %985 = vmatpush.msra.mxu0 0.0
      %986 = vmatpush.msra.mxu0 0.0
      %987 = vmatpush.msra.mxu0 0.0
      %988 = vmatpush.msra.mxu0 0.0
      %989 = vmatpush.msra.mxu0 0.0
      %990 = vmatpush.msra.mxu0 0.0
      %991 = vmatpush.msra.mxu0 0.0
      %992 = vmatpush.msra.mxu0 %v975
      %993 = vmatmul.f32.gmra.mxu0 %v951
      %v994 = vpop.f32.mrf.mxu0
      %v995 = vadd.f32 0.0, %v994
      %996 = vmatmul.f32.gmra.mxu0 %v954
      %v997 = vpop.f32.mrf.mxu0
      %v998 = vadd.f32 0.0, %v997
      %999 = vmatmul.f32.gmra.mxu0 %v957
      %v1000 = vpop.f32.mrf.mxu0
      %v1001 = vadd.f32 0.0, %v1000
      %1002 = vmatmul.f32.gmra.mxu0 %v960
      %v1003 = vpop.f32.mrf.mxu0
      %v1004 = vadd.f32 0.0, %v1003
      %1005 = vmatmul.f32.gmra.mxu0 %v963
      %v1006 = vpop.f32.mrf.mxu0
      %v1007 = vadd.f32 0.0, %v1006
      %1008 = vmatmul.f32.gmra.mxu0 %v966
      %v1009 = vpop.f32.mrf.mxu0
      %v1010 = vadd.f32 0.0, %v1009
      %1011 = vmatmul.f32.gmra.mxu0 %v969
      %v1012 = vpop.f32.mrf.mxu0
      %v1013 = vadd.f32 0.0, %v1012
      %1014 = vmatmul.f32.gmra.mxu0 %v972
      %v1015 = vpop.f32.mrf.mxu0
      %v1016 = vadd.f32 0.0, %v1015
      %1017 = vdwg.mxu0
      %v1018 = vadd.f32 %v932, %v995
      %v1019 = vadd.f32 %v933, %v998
      %v1020 = vadd.f32 %v934, %v1001
      %v1021 = vadd.f32 %v935, %v1004
      %v1022 = vadd.f32 %v936, %v1007
      %v1023 = vadd.f32 %v937, %v1010
      %v1024 = vadd.f32 %v938, %v1013
      %v1025 = vadd.f32 %v939, %v1016
      %v1026 = vld [vmem:[#allocation2 + $0xc] sm:$0xff]
      %v1027 = vld [vmem:[#allocation2 + $0x14] sm:$0xff]
      %v1028 = vld [vmem:[#allocation2 + $0x1c] sm:$0xff]
      %v1029 = vld [vmem:[#allocation2 + $0x24] sm:$0xff]
      %v1030 = vld [vmem:[#allocation2 + $0x2c] sm:$0xff]
      %v1031 = vld [vmem:[#allocation2 + $0x34] sm:$0xff]
      %v1032 = vld [vmem:[#allocation2 + $0x3c] sm:$0xff]
      %v1033 = vld [vmem:[#allocation2 + $0x44] sm:$0xf]
      %s1034 = scalar_lea.vmem %s4, 20
      %v1035 = vld [vmem:[%s1034] sm:$0xf]
      %v1037 = vsel %vm594, %v1026, 0
      %v1040 = vsel %vm594, %v1027, 0
      %v1043 = vsel %vm594, %v1028, 0
      %v1046 = vsel %vm594, %v1029, 0
      %v1049 = vsel %vm594, %v1030, 0
      %v1052 = vsel %vm594, %v1031, 0
      %v1055 = vsel %vm594, %v1032, 0
      %v1058 = vsel %vm594, %v1033, 0
      %v1061 = vsel %vm655, %v1035, 0
      %1063 = vmatpush.msra.mxu0 0.0
      %1064 = vmatpush.msra.mxu0 0.0
      %1065 = vmatpush.msra.mxu0 0.0
      %1066 = vmatpush.msra.mxu0 0.0
      %1067 = vmatpush.msra.mxu0 0.0
      %1068 = vmatpush.msra.mxu0 0.0
      %1069 = vmatpush.msra.mxu0 0.0
      %1070 = vmatpush.msra.mxu0 0.0
      %1071 = vmatpush.msra.mxu0 0.0
      %1072 = vmatpush.msra.mxu0 0.0
      %1073 = vmatpush.msra.mxu0 0.0
      %1074 = vmatpush.msra.mxu0 0.0
      %1075 = vmatpush.msra.mxu0 0.0
      %1076 = vmatpush.msra.mxu0 0.0
      %1077 = vmatpush.msra.mxu0 0.0
      %1078 = vmatpush.msra.mxu0 %v1061
      %1079 = vmatmul.f32.gmra.mxu0 %v1037
      %v1080 = vpop.f32.mrf.mxu0
      %v1081 = vadd.f32 0.0, %v1080
      %1082 = vmatmul.f32.gmra.mxu0 %v1040
      %v1083 = vpop.f32.mrf.mxu0
      %v1084 = vadd.f32 0.0, %v1083
      %1085 = vmatmul.f32.gmra.mxu0 %v1043
      %v1086 = vpop.f32.mrf.mxu0
      %v1087 = vadd.f32 0.0, %v1086
      %1088 = vmatmul.f32.gmra.mxu0 %v1046
      %v1089 = vpop.f32.mrf.mxu0
      %v1090 = vadd.f32 0.0, %v1089
      %1091 = vmatmul.f32.gmra.mxu0 %v1049
      %v1092 = vpop.f32.mrf.mxu0
      %v1093 = vadd.f32 0.0, %v1092
      %1094 = vmatmul.f32.gmra.mxu0 %v1052
      %v1095 = vpop.f32.mrf.mxu0
      %v1096 = vadd.f32 0.0, %v1095
      %1097 = vmatmul.f32.gmra.mxu0 %v1055
      %v1098 = vpop.f32.mrf.mxu0
      %v1099 = vadd.f32 0.0, %v1098
      %1100 = vmatmul.f32.gmra.mxu0 %v1058
      %v1101 = vpop.f32.mrf.mxu0
      %v1102 = vadd.f32 0.0, %v1101
      %1103 = vdwg.mxu0
      %v1104 = vadd.f32 %v1018, %v1081
      %v1105 = vadd.f32 %v1019, %v1084
      %v1106 = vadd.f32 %v1020, %v1087
      %v1107 = vadd.f32 %v1021, %v1090
      %v1108 = vadd.f32 %v1022, %v1093
      %v1109 = vadd.f32 %v1023, %v1096
      %v1110 = vadd.f32 %v1024, %v1099
      %v1111 = vadd.f32 %v1025, %v1102
      %v1112 = vld [vmem:[#allocation2 + $0x14] sm:$0xff]
      %v1113 = vld [vmem:[#allocation2 + $0x1c] sm:$0xff]
      %v1114 = vld [vmem:[#allocation2 + $0x24] sm:$0xff]
      %v1115 = vld [vmem:[#allocation2 + $0x2c] sm:$0xff]
      %v1116 = vld [vmem:[#allocation2 + $0x34] sm:$0xff]
      %v1117 = vld [vmem:[#allocation2 + $0x3c] sm:$0xff]
      %v1118 = vld [vmem:[#allocation2 + $0x44] sm:$0xff]
      %v1119 = vld [vmem:[#allocation2 + $0x4c] sm:$0xf]
      %s1120 = scalar_lea.vmem %s4, 24
      %v1121 = vld [vmem:[%s1120] sm:$0xf]
      %v1123 = vsel %vm594, %v1112, 0
      %v1126 = vsel %vm594, %v1113, 0
      %v1129 = vsel %vm594, %v1114, 0
      %v1132 = vsel %vm594, %v1115, 0
      %v1135 = vsel %vm594, %v1116, 0
      %v1138 = vsel %vm594, %v1117, 0
      %v1141 = vsel %vm594, %v1118, 0
      %v1144 = vsel %vm594, %v1119, 0
      %v1147 = vsel %vm655, %v1121, 0
      %1149 = vmatpush.msra.mxu0 0.0
      %1150 = vmatpush.msra.mxu0 0.0
      %1151 = vmatpush.msra.mxu0 0.0
      %1152 = vmatpush.msra.mxu0 0.0
      %1153 = vmatpush.msra.mxu0 0.0
      %1154 = vmatpush.msra.mxu0 0.0
      %1155 = vmatpush.msra.mxu0 0.0
      %1156 = vmatpush.msra.mxu0 0.0
      %1157 = vmatpush.msra.mxu0 0.0
      %1158 = vmatpush.msra.mxu0 0.0
      %1159 = vmatpush.msra.mxu0 0.0
      %1160 = vmatpush.msra.mxu0 0.0
      %1161 = vmatpush.msra.mxu0 0.0
      %1162 = vmatpush.msra.mxu0 0.0
      %1163 = vmatpush.msra.mxu0 0.0
      %1164 = vmatpush.msra.mxu0 %v1147
      %1165 = vmatmul.f32.gmra.mxu0 %v1123
      %v1166 = vpop.f32.mrf.mxu0
      %v1167 = vadd.f32 0.0, %v1166
      %1168 = vmatmul.f32.gmra.mxu0 %v1126
      %v1169 = vpop.f32.mrf.mxu0
      %v1170 = vadd.f32 0.0, %v1169
      %1171 = vmatmul.f32.gmra.mxu0 %v1129
      %v1172 = vpop.f32.mrf.mxu0
      %v1173 = vadd.f32 0.0, %v1172
      %1174 = vmatmul.f32.gmra.mxu0 %v1132
      %v1175 = vpop.f32.mrf.mxu0
      %v1176 = vadd.f32 0.0, %v1175
      %1177 = vmatmul.f32.gmra.mxu0 %v1135
      %v1178 = vpop.f32.mrf.mxu0
      %v1179 = vadd.f32 0.0, %v1178
      %1180 = vmatmul.f32.gmra.mxu0 %v1138
      %v1181 = vpop.f32.mrf.mxu0
      %v1182 = vadd.f32 0.0, %v1181
      %1183 = vmatmul.f32.gmra.mxu0 %v1141
      %v1184 = vpop.f32.mrf.mxu0
      %v1185 = vadd.f32 0.0, %v1184
      %1186 = vmatmul.f32.gmra.mxu0 %v1144
      %v1187 = vpop.f32.mrf.mxu0
      %v1188 = vadd.f32 0.0, %v1187
      %1189 = vdwg.mxu0
      %v1190 = vadd.f32 %v1104, %v1167
      %v1191 = vadd.f32 %v1105, %v1170
      %v1192 = vadd.f32 %v1106, %v1173
      %v1193 = vadd.f32 %v1107, %v1176
      %v1194 = vadd.f32 %v1108, %v1179
      %v1195 = vadd.f32 %v1109, %v1182
      %v1196 = vadd.f32 %v1110, %v1185
      %v1197 = vadd.f32 %v1111, %v1188
      %v1198 = vld [vmem:[#allocation2 + $0x15] sm:$0xff]
      %v1199 = vld [vmem:[#allocation2 + $0x1d] sm:$0xff]
      %v1200 = vld [vmem:[#allocation2 + $0x25] sm:$0xff]
      %v1201 = vld [vmem:[#allocation2 + $0x2d] sm:$0xff]
      %v1202 = vld [vmem:[#allocation2 + $0x35] sm:$0xff]
      %v1203 = vld [vmem:[#allocation2 + $0x3d] sm:$0xff]
      %v1204 = vld [vmem:[#allocation2 + $0x45] sm:$0xff]
      %v1205 = vld [vmem:[#allocation2 + $0x4d] sm:$0xf]
      %s1206 = scalar_lea.vmem %s4, 28
      %v1207 = vld [vmem:[%s1206] sm:$0xf]
      %v1209 = vsel %vm594, %v1198, 0
      %v1212 = vsel %vm594, %v1199, 0
      %v1215 = vsel %vm594, %v1200, 0
      %v1218 = vsel %vm594, %v1201, 0
      %v1221 = vsel %vm594, %v1202, 0
      %v1224 = vsel %vm594, %v1203, 0
      %v1227 = vsel %vm594, %v1204, 0
      %v1230 = vsel %vm594, %v1205, 0
      %v1233 = vsel %vm655, %v1207, 0
      %1235 = vmatpush.msra.mxu0 0.0
      %1236 = vmatpush.msra.mxu0 0.0
      %1237 = vmatpush.msra.mxu0 0.0
      %1238 = vmatpush.msra.mxu0 0.0
      %1239 = vmatpush.msra.mxu0 0.0
      %1240 = vmatpush.msra.mxu0 0.0
      %1241 = vmatpush.msra.mxu0 0.0
      %1242 = vmatpush.msra.mxu0 0.0
      %1243 = vmatpush.msra.mxu0 0.0
      %1244 = vmatpush.msra.mxu0 0.0
      %1245 = vmatpush.msra.mxu0 0.0
      %1246 = vmatpush.msra.mxu0 0.0
      %1247 = vmatpush.msra.mxu0 0.0
      %1248 = vmatpush.msra.mxu0 0.0
      %1249 = vmatpush.msra.mxu0 0.0
      %1250 = vmatpush.msra.mxu0 %v1233
      %1251 = vmatmul.f32.gmra.mxu0 %v1209
      %v1252 = vpop.f32.mrf.mxu0
      %v1253 = vadd.f32 0.0, %v1252
      %1254 = vmatmul.f32.gmra.mxu0 %v1212
      %v1255 = vpop.f32.mrf.mxu0
      %v1256 = vadd.f32 0.0, %v1255
      %1257 = vmatmul.f32.gmra.mxu0 %v1215
      %v1258 = vpop.f32.mrf.mxu0
      %v1259 = vadd.f32 0.0, %v1258
      %1260 = vmatmul.f32.gmra.mxu0 %v1218
      %v1261 = vpop.f32.mrf.mxu0
      %v1262 = vadd.f32 0.0, %v1261
      %1263 = vmatmul.f32.gmra.mxu0 %v1221
      %v1264 = vpop.f32.mrf.mxu0
      %v1265 = vadd.f32 0.0, %v1264
      %1266 = vmatmul.f32.gmra.mxu0 %v1224
      %v1267 = vpop.f32.mrf.mxu0
      %v1268 = vadd.f32 0.0, %v1267
      %1269 = vmatmul.f32.gmra.mxu0 %v1227
      %v1270 = vpop.f32.mrf.mxu0
      %v1271 = vadd.f32 0.0, %v1270
      %1272 = vmatmul.f32.gmra.mxu0 %v1230
      %v1273 = vpop.f32.mrf.mxu0
      %v1274 = vadd.f32 0.0, %v1273
      %1275 = vdwg.mxu0
      %v1276 = vadd.f32 %v1190, %v1253
      %v1277 = vadd.f32 %v1191, %v1256
      %v1278 = vadd.f32 %v1192, %v1259
      %v1279 = vadd.f32 %v1193, %v1262
      %v1280 = vadd.f32 %v1194, %v1265
      %v1281 = vadd.f32 %v1195, %v1268
      %v1282 = vadd.f32 %v1196, %v1271
      %v1283 = vadd.f32 %v1197, %v1274
      %v1284 = vld [vmem:[#allocation2 + $0x16] sm:$0xff]
      %v1285 = vld [vmem:[#allocation2 + $0x1e] sm:$0xff]
      %v1286 = vld [vmem:[#allocation2 + $0x26] sm:$0xff]
      %v1287 = vld [vmem:[#allocation2 + $0x2e] sm:$0xff]
      %v1288 = vld [vmem:[#allocation2 + $0x36] sm:$0xff]
      %v1289 = vld [vmem:[#allocation2 + $0x3e] sm:$0xff]
      %v1290 = vld [vmem:[#allocation2 + $0x46] sm:$0xff]
      %v1291 = vld [vmem:[#allocation2 + $0x4e] sm:$0xf]
      %s1292 = scalar_lea.vmem %s4, 32
      %v1293 = vld [vmem:[%s1292] sm:$0xf]
      %v1295 = vsel %vm594, %v1284, 0
      %v1298 = vsel %vm594, %v1285, 0
      %v1301 = vsel %vm594, %v1286, 0
      %v1304 = vsel %vm594, %v1287, 0
      %v1307 = vsel %vm594, %v1288, 0
      %v1310 = vsel %vm594, %v1289, 0
      %v1313 = vsel %vm594, %v1290, 0
      %v1316 = vsel %vm594, %v1291, 0
      %v1319 = vsel %vm655, %v1293, 0
      %1321 = vmatpush.msra.mxu0 0.0
      %1322 = vmatpush.msra.mxu0 0.0
      %1323 = vmatpush.msra.mxu0 0.0
      %1324 = vmatpush.msra.mxu0 0.0
      %1325 = vmatpush.msra.mxu0 0.0
      %1326 = vmatpush.msra.mxu0 0.0
      %1327 = vmatpush.msra.mxu0 0.0
      %1328 = vmatpush.msra.mxu0 0.0
      %1329 = vmatpush.msra.mxu0 0.0
      %1330 = vmatpush.msra.mxu0 0.0
      %1331 = vmatpush.msra.mxu0 0.0
      %1332 = vmatpush.msra.mxu0 0.0
      %1333 = vmatpush.msra.mxu0 0.0
      %1334 = vmatpush.msra.mxu0 0.0
      %1335 = vmatpush.msra.mxu0 0.0
      %1336 = vmatpush.msra.mxu0 %v1319
      %1337 = vmatmul.f32.gmra.mxu0 %v1295
      %v1338 = vpop.f32.mrf.mxu0
      %v1339 = vadd.f32 0.0, %v1338
      %1340 = vmatmul.f32.gmra.mxu0 %v1298
      %v1341 = vpop.f32.mrf.mxu0
      %v1342 = vadd.f32 0.0, %v1341
      %1343 = vmatmul.f32.gmra.mxu0 %v1301
      %v1344 = vpop.f32.mrf.mxu0
      %v1345 = vadd.f32 0.0, %v1344
      %1346 = vmatmul.f32.gmra.mxu0 %v1304
      %v1347 = vpop.f32.mrf.mxu0
      %v1348 = vadd.f32 0.0, %v1347
      %1349 = vmatmul.f32.gmra.mxu0 %v1307
      %v1350 = vpop.f32.mrf.mxu0
      %v1351 = vadd.f32 0.0, %v1350
      %1352 = vmatmul.f32.gmra.mxu0 %v1310
      %v1353 = vpop.f32.mrf.mxu0
      %v1354 = vadd.f32 0.0, %v1353
      %1355 = vmatmul.f32.gmra.mxu0 %v1313
      %v1356 = vpop.f32.mrf.mxu0
      %v1357 = vadd.f32 0.0, %v1356
      %1358 = vmatmul.f32.gmra.mxu0 %v1316
      %v1359 = vpop.f32.mrf.mxu0
      %v1360 = vadd.f32 0.0, %v1359
      %1361 = vdwg.mxu0
      %v1362 = vadd.f32 %v1276, %v1339
      %v1363 = vadd.f32 %v1277, %v1342
      %v1364 = vadd.f32 %v1278, %v1345
      %v1365 = vadd.f32 %v1279, %v1348
      %v1366 = vadd.f32 %v1280, %v1351
      %v1367 = vadd.f32 %v1281, %v1354
      %v1368 = vadd.f32 %v1282, %v1357
      %v1369 = vadd.f32 %v1283, %v1360
      %v1370 = vld [vmem:[%s5] sm:$0x1]
      %v1372 = vperm.slane %v1370, 0
      %v1374 = vadd.f32 %v1362, %v1372
      %v1375 = vadd.f32 %v1363, %v1372
      %v1376 = vadd.f32 %v1364, %v1372
      %v1377 = vadd.f32 %v1365, %v1372
      %v1378 = vadd.f32 %v1366, %v1372
      %v1379 = vadd.f32 %v1367, %v1372
      %v1380 = vadd.f32 %v1368, %v1372
      %v1381 = vadd.f32 %v1369, %v1372
      %v1382 = vmax.f32 %v1374, 0.0
      %v1383 = vmax.f32 %v1375, 0.0
      %v1384 = vmax.f32 %v1376, 0.0
      %v1385 = vmax.f32 %v1377, 0.0
      %v1386 = vmax.f32 %v1378, 0.0
      %v1387 = vmax.f32 %v1379, 0.0
      %v1388 = vmax.f32 %v1380, 0.0
      %v1389 = vmax.f32 %v1381, 0.0
      %v1390 = vlaneseq
      %v1391 = vshrl.u32 %v1390, 7
      %v1392 = vadd.s32 %v1391, 8
      %vm1393 = vcmp.ge.s32.totalorder %v1391, 1
      %vm1394 = vcmp.ge.s32.totalorder %v1392, 1
      %vm1395 = vcmp.le.s32.totalorder %v1391, 8
      %vm1396 = vcmp.le.s32.totalorder %v1392, 8
      %vm1397 = vmand %vm1393, %vm1395
      %vm1398 = vmand %vm1394, %vm1396
      %vm1399 = vcmask 57344
      %1400 = vst.msk [vmem:[#allocation3] sm:$0x1] %vm1399, 0.0
      %1401 = vst.msk [vmem:[#allocation3 + $0x3d] sm:$0x1] %vm1399, 0.0
      %s1402 = smul.u32 %s24, 4
      %s1403 = ssub.s32 %s1402, 1
      %p1404 = scmp.ge.s32.totalorder %s1403, 0
      %p1405 = scmp.lt.s32.totalorder %s1403, 8
      %p1406 = pnand %p1404, %p1405
      %p1407 = pneg %p1406
      %s1408 = scalar_select %p1407, 1, 0
      %v1409 = vstv %s1408
      %vm1410 = vcmp.eq.s32.totalorder %v1409, 1
      %vm1411 = vmand %vm1397, %vm1410
      %vm1412 = vmand %vm1398, %vm1410
      %v1413 = vsel %vm1411, 1, 0
      %v1414 = vsel %vm1412, 1, 0
      %vm1415 = vcmp.eq.s32.totalorder %v1413, 1
      %vm1416 = vcmp.eq.s32.totalorder %v1414, 1
      %v1417 = vsel %vm1415, %v1382, 0.0
      %v1418 = vsel %vm1416, %v1383, 0.0
      %vm1419 = vcmask 64512
      %1420 = vst.msk [vmem:[#allocation3 + $0x1] sm:$0xff] %vm1419, %v1417
      %vm1421 = vcmask 58368
      %1422 = vst.msk [vmem:[#allocation3 + $0x9] sm:$0x3] %vm1421, %v1418
      %p1423 = scmp.ge.s32.totalorder %s1402, 0
      %p1424 = scmp.lt.s32.totalorder %s1402, 8
      %p1425 = pnand %p1423, %p1424
      %p1426 = pneg %p1425
      %s1427 = scalar_select %p1426, 1, 0
      %v1428 = vstv %s1427
      %vm1429 = vcmp.eq.s32.totalorder %v1428, 1
      %vm1430 = vmand %vm1397, %vm1429
      %vm1431 = vmand %vm1398, %vm1429
      %v1432 = vsel %vm1430, 1, 0
      %v1433 = vsel %vm1431, 1, 0
      %vm1434 = vcmp.eq.s32.totalorder %v1432, 1
      %vm1435 = vcmp.eq.s32.totalorder %v1433, 1
      %vm1438 = vcmask 1045504
      %v1439 = vrot.slane %v1383, 2
      %v1440 = vrot.slane %v1384, 2
      %v1441 = vsel %vm1438, %v1439, %v1440
      %v1444 = vsel %vm1434, %v1441, 0.0
      %v1445 = vsel %vm1435, %v1440, 0.0
      %1446 = vst.msk [vmem:[#allocation3 + $0xb] sm:$0xff] %vm1419, %v1444
      %1447 = vst.msk [vmem:[#allocation3 + $0x13] sm:$0x3] %vm1421, %v1445
      %s1448 = sadd.s32 %s1402, 1
      %p1449 = scmp.ge.s32.totalorder %s1448, 0
      %p1450 = scmp.lt.s32.totalorder %s1448, 8
      %p1451 = pnand %p1449, %p1450
      %p1452 = pneg %p1451
      %s1453 = scalar_select %p1452, 1, 0
      %v1454 = vstv %s1453
      %vm1455 = vcmp.eq.s32.totalorder %v1454, 1
      %vm1456 = vmand %vm1397, %vm1455
      %vm1457 = vmand %vm1398, %vm1455
      %v1458 = vsel %vm1456, 1, 0
      %v1459 = vsel %vm1457, 1, 0
      %vm1460 = vcmp.eq.s32.totalorder %v1458, 1
      %vm1461 = vcmp.eq.s32.totalorder %v1459, 1
      %v1463 = vrot.slane %v1384, 4
      %v1464 = vrot.slane %v1385, 4
      %v1465 = vsel %vm655, %v1463, %v1464
      %v1468 = vsel %vm1460, %v1465, 0.0
      %v1469 = vsel %vm1461, %v1464, 0.0
      %1470 = vst.msk [vmem:[#allocation3 + $0x15] sm:$0xff] %vm1419, %v1468
      %1471 = vst.msk [vmem:[#allocation3 + $0x1d] sm:$0x3] %vm1421, %v1469
      %s1472 = sadd.s32 %s1402, 2
      %p1473 = scmp.ge.s32.totalorder %s1472, 0
      %p1474 = scmp.lt.s32.totalorder %s1472, 8
      %p1475 = pnand %p1473, %p1474
      %p1476 = pneg %p1475
      %s1477 = scalar_select %p1476, 1, 0
      %v1478 = vstv %s1477
      %vm1479 = vcmp.eq.s32.totalorder %v1478, 1
      %vm1480 = vmand %vm1397, %vm1479
      %vm1481 = vmand %vm1398, %vm1479
      %v1482 = vsel %vm1480, 1, 0
      %v1483 = vsel %vm1481, 1, 0
      %vm1484 = vcmp.eq.s32.totalorder %v1482, 1
      %vm1485 = vcmp.eq.s32.totalorder %v1483, 1
      %vm1487 = vcmask 1041408
      %v1488 = vrot.slane %v1385, 6
      %v1489 = vrot.slane %v1386, 6
      %v1490 = vsel %vm1487, %v1488, %v1489
      %v1493 = vsel %vm1484, %v1490, 0.0
      %v1494 = vsel %vm1485, %v1489, 0.0
      %1495 = vst.msk [vmem:[#allocation3 + $0x1f] sm:$0xff] %vm1419, %v1493
      %1496 = vst.msk [vmem:[#allocation3 + $0x27] sm:$0x3] %vm1421, %v1494
      %s1497 = sadd.s32 %s1402, 3
      %p1498 = scmp.ge.s32.totalorder %s1497, 0
      %p1499 = scmp.lt.s32.totalorder %s1497, 8
      %p1500 = pnand %p1498, %p1499
      %p1501 = pneg %p1500
      %s1502 = scalar_select %p1501, 1, 0
      %v1503 = vstv %s1502
      %vm1504 = vcmp.eq.s32.totalorder %v1503, 1
      %vm1505 = vmand %vm1397, %vm1504
      %vm1506 = vmand %vm1398, %vm1504
      %v1507 = vsel %vm1505, 1, 0
      %v1508 = vsel %vm1506, 1, 0
      %vm1509 = vcmp.eq.s32.totalorder %v1507, 1
      %vm1510 = vcmp.eq.s32.totalorder %v1508, 1
      %v1511 = vsel %vm1509, %v1387, 0.0
      %v1512 = vsel %vm1510, %v1388, 0.0
      %1513 = vst.msk [vmem:[#allocation3 + $0x29] sm:$0xff] %vm1419, %v1511
      %1514 = vst.msk [vmem:[#allocation3 + $0x31] sm:$0x3] %vm1421, %v1512
      %s1515 = sadd.s32 %s1402, 4
      %p1516 = scmp.ge.s32.totalorder %s1515, 0
      %p1517 = scmp.lt.s32.totalorder %s1515, 8
      %p1518 = pnand %p1516, %p1517
      %p1519 = pneg %p1518
      %s1520 = scalar_select %p1519, 1, 0
      %v1521 = vstv %s1520
      %vm1522 = vcmp.eq.s32.totalorder %v1521, 1
      %vm1523 = vmand %vm1397, %vm1522
      %vm1524 = vmand %vm1398, %vm1522
      %v1525 = vsel %vm1523, 1, 0
      %v1526 = vsel %vm1524, 1, 0
      %vm1527 = vcmp.eq.s32.totalorder %v1525, 1
      %vm1528 = vcmp.eq.s32.totalorder %v1526, 1
      %v1531 = vrot.slane %v1388, 2
      %v1532 = vrot.slane %v1389, 2
      %v1533 = vsel %vm1438, %v1531, %v1532
      %v1536 = vsel %vm1527, %v1533, 0.0
      %v1537 = vsel %vm1528, %v1532, 0.0
      %1538 = vst.msk [vmem:[#allocation3 + $0x33] sm:$0xff] %vm1419, %v1536
      %1539 = vst.msk [vmem:[#allocation3 + $0x3b] sm:$0x3] %vm1421, %v1537
      %v1540 = vld [vmem:[#allocation3] sm:$0xff]
      %v1541 = vld [vmem:[#allocation3 + $0x8] sm:$0xff]
      %v1542 = vld [vmem:[#allocation3 + $0x10] sm:$0xff]
      %v1543 = vld [vmem:[#allocation3 + $0x18] sm:$0xff]
      %v1544 = vld [vmem:[#allocation3 + $0x20] sm:$0xff]
      %v1545 = vld [vmem:[%s6] sm:$0xff]
      %v1546 = vld [vmem:[#allocation3 + $0x1] sm:$0xff]
      %v1547 = vld [vmem:[#allocation3 + $0x9] sm:$0xff]
      %v1548 = vld [vmem:[#allocation3 + $0x11] sm:$0xff]
      %v1549 = vld [vmem:[#allocation3 + $0x19] sm:$0xff]
      %v1550 = vld [vmem:[#allocation3 + $0x21] sm:$0xff]
      %s1551 = scalar_lea.vmem %s6, 8
      %v1552 = vld [vmem:[%s1551] sm:$0xff]
      %v1554 = vsel %vm1419, %v1546, 0
      %v1557 = vsel %vm1419, %v1547, 0
      %v1560 = vsel %vm1419, %v1548, 0
      %v1563 = vsel %vm1419, %v1549, 0
      %v1566 = vsel %vm1419, %v1550, 0
      %1568 = vmatpush.msra.mxu0 0.0
      %1569 = vmatpush.msra.mxu0 0.0
      %1570 = vmatpush.msra.mxu0 0.0
      %1571 = vmatpush.msra.mxu0 0.0
      %1572 = vmatpush.msra.mxu0 0.0
      %1573 = vmatpush.msra.mxu0 0.0
      %1574 = vmatpush.msra.mxu0 0.0
      %1575 = vmatpush.msra.mxu0 0.0
      %1576 = vmatpush.msra.mxu0 0.0
      %1577 = vmatpush.msra.mxu0 0.0
      %1578 = vmatpush.msra.mxu0 0.0
      %1579 = vmatpush.msra.mxu0 0.0
      %1580 = vmatpush.msra.mxu0 0.0
      %1581 = vmatpush.msra.mxu0 0.0
      %1582 = vmatpush.msra.mxu0 0.0
      %1583 = vmatpush.msra.mxu0 %v1552
      %1584 = vmatmul.f32.gmra.mxu0 %v1554
      %v1585 = vpop.f32.mrf.mxu0
      %v1586 = vadd.f32 0.0, %v1585
      %1587 = vmatmul.f32.gmra.mxu0 %v1557
      %v1588 = vpop.f32.mrf.mxu0
      %v1589 = vadd.f32 0.0, %v1588
      %1590 = vmatmul.f32.gmra.mxu0 %v1560
      %v1591 = vpop.f32.mrf.mxu0
      %v1592 = vadd.f32 0.0, %v1591
      %1593 = vmatmul.f32.gmra.mxu0 %v1563
      %v1594 = vpop.f32.mrf.mxu0
      %v1595 = vadd.f32 0.0, %v1594
      %1596 = vmatmul.f32.gmra.mxu0 %v1566
      %v1597 = vpop.f32.mrf.mxu0
      %v1598 = vadd.f32 0.0, %v1597
      %1599 = vdwg.mxu0
      %v1601 = vsel %vm1419, %v1540, 0
      %v1604 = vsel %vm1419, %v1541, 0
      %v1607 = vsel %vm1419, %v1542, 0
      %v1610 = vsel %vm1419, %v1543, 0
      %v1613 = vsel %vm1419, %v1544, 0
      %1615 = vmatpush.msra.mxu0 0.0
      %1616 = vmatpush.msra.mxu0 0.0
      %1617 = vmatpush.msra.mxu0 0.0
      %1618 = vmatpush.msra.mxu0 0.0
      %1619 = vmatpush.msra.mxu0 0.0
      %1620 = vmatpush.msra.mxu0 0.0
      %1621 = vmatpush.msra.mxu0 0.0
      %1622 = vmatpush.msra.mxu0 0.0
      %1623 = vmatpush.msra.mxu0 0.0
      %1624 = vmatpush.msra.mxu0 0.0
      %1625 = vmatpush.msra.mxu0 0.0
      %1626 = vmatpush.msra.mxu0 0.0
      %1627 = vmatpush.msra.mxu0 0.0
      %1628 = vmatpush.msra.mxu0 0.0
      %1629 = vmatpush.msra.mxu0 0.0
      %1630 = vmatpush.msra.mxu0 %v1545
      %1631 = vmatmul.f32.gmra.mxu0 %v1601
      %v1632 = vpop.f32.mrf.mxu0
      %v1633 = vadd.f32 %v1586, %v1632
      %1634 = vmatmul.f32.gmra.mxu0 %v1604
      %v1635 = vpop.f32.mrf.mxu0
      %v1636 = vadd.f32 %v1589, %v1635
      %1637 = vmatmul.f32.gmra.mxu0 %v1607
      %v1638 = vpop.f32.mrf.mxu0
      %v1639 = vadd.f32 %v1592, %v1638
      %1640 = vmatmul.f32.gmra.mxu0 %v1610
      %v1641 = vpop.f32.mrf.mxu0
      %v1642 = vadd.f32 %v1595, %v1641
      %1643 = vmatmul.f32.gmra.mxu0 %v1613
      %v1644 = vpop.f32.mrf.mxu0
      %v1645 = vadd.f32 %v1598, %v1644
      %1646 = vdwg.mxu0
      %v1647 = vld [vmem:[#allocation3 + $0x2] sm:$0xff]
      %v1648 = vld [vmem:[#allocation3 + $0xa] sm:$0xff]
      %v1649 = vld [vmem:[#allocation3 + $0x12] sm:$0xff]
      %v1650 = vld [vmem:[#allocation3 + $0x1a] sm:$0xff]
      %v1651 = vld [vmem:[#allocation3 + $0x22] sm:$0xff]
      %s1652 = scalar_lea.vmem %s6, 16
      %v1653 = vld [vmem:[%s1652] sm:$0xff]
      %v1655 = vsel %vm1419, %v1647, 0
      %v1658 = vsel %vm1419, %v1648, 0
      %v1661 = vsel %vm1419, %v1649, 0
      %v1664 = vsel %vm1419, %v1650, 0
      %v1667 = vsel %vm1419, %v1651, 0
      %1669 = vmatpush.msra.mxu0 0.0
      %1670 = vmatpush.msra.mxu0 0.0
      %1671 = vmatpush.msra.mxu0 0.0
      %1672 = vmatpush.msra.mxu0 0.0
      %1673 = vmatpush.msra.mxu0 0.0
      %1674 = vmatpush.msra.mxu0 0.0
      %1675 = vmatpush.msra.mxu0 0.0
      %1676 = vmatpush.msra.mxu0 0.0
      %1677 = vmatpush.msra.mxu0 0.0
      %1678 = vmatpush.msra.mxu0 0.0
      %1679 = vmatpush.msra.mxu0 0.0
      %1680 = vmatpush.msra.mxu0 0.0
      %1681 = vmatpush.msra.mxu0 0.0
      %1682 = vmatpush.msra.mxu0 0.0
      %1683 = vmatpush.msra.mxu0 0.0
      %1684 = vmatpush.msra.mxu0 %v1653
      %1685 = vmatmul.f32.gmra.mxu0 %v1655
      %v1686 = vpop.f32.mrf.mxu0
      %v1687 = vadd.f32 0.0, %v1686
      %1688 = vmatmul.f32.gmra.mxu0 %v1658
      %v1689 = vpop.f32.mrf.mxu0
      %v1690 = vadd.f32 0.0, %v1689
      %1691 = vmatmul.f32.gmra.mxu0 %v1661
      %v1692 = vpop.f32.mrf.mxu0
      %v1693 = vadd.f32 0.0, %v1692
      %1694 = vmatmul.f32.gmra.mxu0 %v1664
      %v1695 = vpop.f32.mrf.mxu0
      %v1696 = vadd.f32 0.0, %v1695
      %1697 = vmatmul.f32.gmra.mxu0 %v1667
      %v1698 = vpop.f32.mrf.mxu0
      %v1699 = vadd.f32 0.0, %v1698
      %1700 = vdwg.mxu0
      %v1701 = vadd.f32 %v1633, %v1687
      %v1702 = vadd.f32 %v1636, %v1690
      %v1703 = vadd.f32 %v1639, %v1693
      %v1704 = vadd.f32 %v1642, %v1696
      %v1705 = vadd.f32 %v1645, %v1699
      %v1706 = vld [vmem:[#allocation3 + $0xa] sm:$0xff]
      %v1707 = vld [vmem:[#allocation3 + $0x12] sm:$0xff]
      %v1708 = vld [vmem:[#allocation3 + $0x1a] sm:$0xff]
      %v1709 = vld [vmem:[#allocation3 + $0x22] sm:$0xff]
      %v1710 = vld [vmem:[#allocation3 + $0x2a] sm:$0xff]
      %s1711 = scalar_lea.vmem %s6, 24
      %v1712 = vld [vmem:[%s1711] sm:$0xff]
      %v1714 = vsel %vm1419, %v1706, 0
      %v1717 = vsel %vm1419, %v1707, 0
      %v1720 = vsel %vm1419, %v1708, 0
      %v1723 = vsel %vm1419, %v1709, 0
      %v1726 = vsel %vm1419, %v1710, 0
      %1728 = vmatpush.msra.mxu0 0.0
      %1729 = vmatpush.msra.mxu0 0.0
      %1730 = vmatpush.msra.mxu0 0.0
      %1731 = vmatpush.msra.mxu0 0.0
      %1732 = vmatpush.msra.mxu0 0.0
      %1733 = vmatpush.msra.mxu0 0.0
      %1734 = vmatpush.msra.mxu0 0.0
      %1735 = vmatpush.msra.mxu0 0.0
      %1736 = vmatpush.msra.mxu0 0.0
      %1737 = vmatpush.msra.mxu0 0.0
      %1738 = vmatpush.msra.mxu0 0.0
      %1739 = vmatpush.msra.mxu0 0.0
      %1740 = vmatpush.msra.mxu0 0.0
      %1741 = vmatpush.msra.mxu0 0.0
      %1742 = vmatpush.msra.mxu0 0.0
      %1743 = vmatpush.msra.mxu0 %v1712
      %1744 = vmatmul.f32.gmra.mxu0 %v1714
      %v1745 = vpop.f32.mrf.mxu0
      %v1746 = vadd.f32 0.0, %v1745
      %1747 = vmatmul.f32.gmra.mxu0 %v1717
      %v1748 = vpop.f32.mrf.mxu0
      %v1749 = vadd.f32 0.0, %v1748
      %1750 = vmatmul.f32.gmra.mxu0 %v1720
      %v1751 = vpop.f32.mrf.mxu0
      %v1752 = vadd.f32 0.0, %v1751
      %1753 = vmatmul.f32.gmra.mxu0 %v1723
      %v1754 = vpop.f32.mrf.mxu0
      %v1755 = vadd.f32 0.0, %v1754
      %1756 = vmatmul.f32.gmra.mxu0 %v1726
      %v1757 = vpop.f32.mrf.mxu0
      %v1758 = vadd.f32 0.0, %v1757
      %1759 = vdwg.mxu0
      %v1760 = vadd.f32 %v1701, %v1746
      %v1761 = vadd.f32 %v1702, %v1749
      %v1762 = vadd.f32 %v1703, %v1752
      %v1763 = vadd.f32 %v1704, %v1755
      %v1764 = vadd.f32 %v1705, %v1758
      %v1765 = vld [vmem:[#allocation3 + $0xb] sm:$0xff]
      %v1766 = vld [vmem:[#allocation3 + $0x13] sm:$0xff]
      %v1767 = vld [vmem:[#allocation3 + $0x1b] sm:$0xff]
      %v1768 = vld [vmem:[#allocation3 + $0x23] sm:$0xff]
      %v1769 = vld [vmem:[#allocation3 + $0x2b] sm:$0xff]
      %s1770 = scalar_lea.vmem %s6, 32
      %v1771 = vld [vmem:[%s1770] sm:$0xff]
      %v1773 = vsel %vm1419, %v1765, 0
      %v1776 = vsel %vm1419, %v1766, 0
      %v1779 = vsel %vm1419, %v1767, 0
      %v1782 = vsel %vm1419, %v1768, 0
      %v1785 = vsel %vm1419, %v1769, 0
      %1787 = vmatpush.msra.mxu0 0.0
      %1788 = vmatpush.msra.mxu0 0.0
      %1789 = vmatpush.msra.mxu0 0.0
      %1790 = vmatpush.msra.mxu0 0.0
      %1791 = vmatpush.msra.mxu0 0.0
      %1792 = vmatpush.msra.mxu0 0.0
      %1793 = vmatpush.msra.mxu0 0.0
      %1794 = vmatpush.msra.mxu0 0.0
      %1795 = vmatpush.msra.mxu0 0.0
      %1796 = vmatpush.msra.mxu0 0.0
      %1797 = vmatpush.msra.mxu0 0.0
      %1798 = vmatpush.msra.mxu0 0.0
      %1799 = vmatpush.msra.mxu0 0.0
      %1800 = vmatpush.msra.mxu0 0.0
      %1801 = vmatpush.msra.mxu0 0.0
      %1802 = vmatpush.msra.mxu0 %v1771
      %1803 = vmatmul.f32.gmra.mxu0 %v1773
      %v1804 = vpop.f32.mrf.mxu0
      %v1805 = vadd.f32 0.0, %v1804
      %1806 = vmatmul.f32.gmra.mxu0 %v1776
      %v1807 = vpop.f32.mrf.mxu0
      %v1808 = vadd.f32 0.0, %v1807
      %1809 = vmatmul.f32.gmra.mxu0 %v1779
      %v1810 = vpop.f32.mrf.mxu0
      %v1811 = vadd.f32 0.0, %v1810
      %1812 = vmatmul.f32.gmra.mxu0 %v1782
      %v1813 = vpop.f32.mrf.mxu0
      %v1814 = vadd.f32 0.0, %v1813
      %1815 = vmatmul.f32.gmra.mxu0 %v1785
      %v1816 = vpop.f32.mrf.mxu0
      %v1817 = vadd.f32 0.0, %v1816
      %1818 = vdwg.mxu0
      %v1819 = vadd.f32 %v1760, %v1805
      %v1820 = vadd.f32 %v1761, %v1808
      %v1821 = vadd.f32 %v1762, %v1811
      %v1822 = vadd.f32 %v1763, %v1814
      %v1823 = vadd.f32 %v1764, %v1817
      %v1824 = vld [vmem:[#allocation3 + $0xc] sm:$0xff]
      %v1825 = vld [vmem:[#allocation3 + $0x14] sm:$0xff]
      %v1826 = vld [vmem:[#allocation3 + $0x1c] sm:$0xff]
      %v1827 = vld [vmem:[#allocation3 + $0x24] sm:$0xff]
      %v1828 = vld [vmem:[#allocation3 + $0x2c] sm:$0xff]
      %s1829 = scalar_lea.vmem %s6, 40
      %v1830 = vld [vmem:[%s1829] sm:$0xff]
      %v1832 = vsel %vm1419, %v1824, 0
      %v1835 = vsel %vm1419, %v1825, 0
      %v1838 = vsel %vm1419, %v1826, 0
      %v1841 = vsel %vm1419, %v1827, 0
      %v1844 = vsel %vm1419, %v1828, 0
      %1846 = vmatpush.msra.mxu0 0.0
      %1847 = vmatpush.msra.mxu0 0.0
      %1848 = vmatpush.msra.mxu0 0.0
      %1849 = vmatpush.msra.mxu0 0.0
      %1850 = vmatpush.msra.mxu0 0.0
      %1851 = vmatpush.msra.mxu0 0.0
      %1852 = vmatpush.msra.mxu0 0.0
      %1853 = vmatpush.msra.mxu0 0.0
      %1854 = vmatpush.msra.mxu0 0.0
      %1855 = vmatpush.msra.mxu0 0.0
      %1856 = vmatpush.msra.mxu0 0.0
      %1857 = vmatpush.msra.mxu0 0.0
      %1858 = vmatpush.msra.mxu0 0.0
      %1859 = vmatpush.msra.mxu0 0.0
      %1860 = vmatpush.msra.mxu0 0.0
      %1861 = vmatpush.msra.mxu0 %v1830
      %1862 = vmatmul.f32.gmra.mxu0 %v1832
      %v1863 = vpop.f32.mrf.mxu0
      %v1864 = vadd.f32 0.0, %v1863
      %1865 = vmatmul.f32.gmra.mxu0 %v1835
      %v1866 = vpop.f32.mrf.mxu0
      %v1867 = vadd.f32 0.0, %v1866
      %1868 = vmatmul.f32.gmra.mxu0 %v1838
      %v1869 = vpop.f32.mrf.mxu0
      %v1870 = vadd.f32 0.0, %v1869
      %1871 = vmatmul.f32.gmra.mxu0 %v1841
      %v1872 = vpop.f32.mrf.mxu0
      %v1873 = vadd.f32 0.0, %v1872
      %1874 = vmatmul.f32.gmra.mxu0 %v1844
      %v1875 = vpop.f32.mrf.mxu0
      %v1876 = vadd.f32 0.0, %v1875
      %1877 = vdwg.mxu0
      %v1878 = vadd.f32 %v1819, %v1864
      %v1879 = vadd.f32 %v1820, %v1867
      %v1880 = vadd.f32 %v1821, %v1870
      %v1881 = vadd.f32 %v1822, %v1873
      %v1882 = vadd.f32 %v1823, %v1876
      %v1883 = vld [vmem:[#allocation3 + $0x14] sm:$0xff]
      %v1884 = vld [vmem:[#allocation3 + $0x1c] sm:$0xff]
      %v1885 = vld [vmem:[#allocation3 + $0x24] sm:$0xff]
      %v1886 = vld [vmem:[#allocation3 + $0x2c] sm:$0xff]
      %v1887 = vld [vmem:[#allocation3 + $0x34] sm:$0xff]
      %s1888 = scalar_lea.vmem %s6, 48
      %v1889 = vld [vmem:[%s1888] sm:$0xff]
      %v1891 = vsel %vm1419, %v1883, 0
      %v1894 = vsel %vm1419, %v1884, 0
      %v1897 = vsel %vm1419, %v1885, 0
      %v1900 = vsel %vm1419, %v1886, 0
      %v1903 = vsel %vm1419, %v1887, 0
      %1905 = vmatpush.msra.mxu0 0.0
      %1906 = vmatpush.msra.mxu0 0.0
      %1907 = vmatpush.msra.mxu0 0.0
      %1908 = vmatpush.msra.mxu0 0.0
      %1909 = vmatpush.msra.mxu0 0.0
      %1910 = vmatpush.msra.mxu0 0.0
      %1911 = vmatpush.msra.mxu0 0.0
      %1912 = vmatpush.msra.mxu0 0.0
      %1913 = vmatpush.msra.mxu0 0.0
      %1914 = vmatpush.msra.mxu0 0.0
      %1915 = vmatpush.msra.mxu0 0.0
      %1916 = vmatpush.msra.mxu0 0.0
      %1917 = vmatpush.msra.mxu0 0.0
      %1918 = vmatpush.msra.mxu0 0.0
      %1919 = vmatpush.msra.mxu0 0.0
      %1920 = vmatpush.msra.mxu0 %v1889
      %1921 = vmatmul.f32.gmra.mxu0 %v1891
      %v1922 = vpop.f32.mrf.mxu0
      %v1923 = vadd.f32 0.0, %v1922
      %1924 = vmatmul.f32.gmra.mxu0 %v1894
      %v1925 = vpop.f32.mrf.mxu0
      %v1926 = vadd.f32 0.0, %v1925
      %1927 = vmatmul.f32.gmra.mxu0 %v1897
      %v1928 = vpop.f32.mrf.mxu0
      %v1929 = vadd.f32 0.0, %v1928
      %1930 = vmatmul.f32.gmra.mxu0 %v1900
      %v1931 = vpop.f32.mrf.mxu0
      %v1932 = vadd.f32 0.0, %v1931
      %1933 = vmatmul.f32.gmra.mxu0 %v1903
      %v1934 = vpop.f32.mrf.mxu0
      %v1935 = vadd.f32 0.0, %v1934
      %1936 = vdwg.mxu0
      %v1937 = vadd.f32 %v1878, %v1923
      %v1938 = vadd.f32 %v1879, %v1926
      %v1939 = vadd.f32 %v1880, %v1929
      %v1940 = vadd.f32 %v1881, %v1932
      %v1941 = vadd.f32 %v1882, %v1935
      %v1942 = vld [vmem:[#allocation3 + $0x15] sm:$0xff]
      %v1943 = vld [vmem:[#allocation3 + $0x1d] sm:$0xff]
      %v1944 = vld [vmem:[#allocation3 + $0x25] sm:$0xff]
      %v1945 = vld [vmem:[#allocation3 + $0x2d] sm:$0xff]
      %v1946 = vld [vmem:[#allocation3 + $0x35] sm:$0xff]
      %s1947 = scalar_lea.vmem %s6, 56
      %v1948 = vld [vmem:[%s1947] sm:$0xff]
      %v1950 = vsel %vm1419, %v1942, 0
      %v1953 = vsel %vm1419, %v1943, 0
      %v1956 = vsel %vm1419, %v1944, 0
      %v1959 = vsel %vm1419, %v1945, 0
      %v1962 = vsel %vm1419, %v1946, 0
      %1964 = vmatpush.msra.mxu0 0.0
      %1965 = vmatpush.msra.mxu0 0.0
      %1966 = vmatpush.msra.mxu0 0.0
      %1967 = vmatpush.msra.mxu0 0.0
      %1968 = vmatpush.msra.mxu0 0.0
      %1969 = vmatpush.msra.mxu0 0.0
      %1970 = vmatpush.msra.mxu0 0.0
      %1971 = vmatpush.msra.mxu0 0.0
      %1972 = vmatpush.msra.mxu0 0.0
      %1973 = vmatpush.msra.mxu0 0.0
      %1974 = vmatpush.msra.mxu0 0.0
      %1975 = vmatpush.msra.mxu0 0.0
      %1976 = vmatpush.msra.mxu0 0.0
      %1977 = vmatpush.msra.mxu0 0.0
      %1978 = vmatpush.msra.mxu0 0.0
      %1979 = vmatpush.msra.mxu0 %v1948
      %1980 = vmatmul.f32.gmra.mxu0 %v1950
      %v1981 = vpop.f32.mrf.mxu0
      %v1982 = vadd.f32 0.0, %v1981
      %1983 = vmatmul.f32.gmra.mxu0 %v1953
      %v1984 = vpop.f32.mrf.mxu0
      %v1985 = vadd.f32 0.0, %v1984
      %1986 = vmatmul.f32.gmra.mxu0 %v1956
      %v1987 = vpop.f32.mrf.mxu0
      %v1988 = vadd.f32 0.0, %v1987
      %1989 = vmatmul.f32.gmra.mxu0 %v1959
      %v1990 = vpop.f32.mrf.mxu0
      %v1991 = vadd.f32 0.0, %v1990
      %1992 = vmatmul.f32.gmra.mxu0 %v1962
      %v1993 = vpop.f32.mrf.mxu0
      %v1994 = vadd.f32 0.0, %v1993
      %1995 = vdwg.mxu0
      %v1996 = vadd.f32 %v1937, %v1982
      %v1997 = vadd.f32 %v1938, %v1985
      %v1998 = vadd.f32 %v1939, %v1988
      %v1999 = vadd.f32 %v1940, %v1991
      %v2000 = vadd.f32 %v1941, %v1994
      %v2001 = vld [vmem:[#allocation3 + $0x16] sm:$0xff]
      %v2002 = vld [vmem:[#allocation3 + $0x1e] sm:$0xff]
      %v2003 = vld [vmem:[#allocation3 + $0x26] sm:$0xff]
      %v2004 = vld [vmem:[#allocation3 + $0x2e] sm:$0xff]
      %v2005 = vld [vmem:[#allocation3 + $0x36] sm:$0xff]
      %s2006 = scalar_lea.vmem %s6, 64
      %v2007 = vld [vmem:[%s2006] sm:$0xff]
      %v2009 = vsel %vm1419, %v2001, 0
      %v2012 = vsel %vm1419, %v2002, 0
      %v2015 = vsel %vm1419, %v2003, 0
      %v2018 = vsel %vm1419, %v2004, 0
      %v2021 = vsel %vm1419, %v2005, 0
      %2023 = vmatpush.msra.mxu0 0.0
      %2024 = vmatpush.msra.mxu0 0.0
      %2025 = vmatpush.msra.mxu0 0.0
      %2026 = vmatpush.msra.mxu0 0.0
      %2027 = vmatpush.msra.mxu0 0.0
      %2028 = vmatpush.msra.mxu0 0.0
      %2029 = vmatpush.msra.mxu0 0.0
      %2030 = vmatpush.msra.mxu0 0.0
      %2031 = vmatpush.msra.mxu0 0.0
      %2032 = vmatpush.msra.mxu0 0.0
      %2033 = vmatpush.msra.mxu0 0.0
      %2034 = vmatpush.msra.mxu0 0.0
      %2035 = vmatpush.msra.mxu0 0.0
      %2036 = vmatpush.msra.mxu0 0.0
      %2037 = vmatpush.msra.mxu0 0.0
      %2038 = vmatpush.msra.mxu0 %v2007
      %2039 = vmatmul.f32.gmra.mxu0 %v2009
      %v2040 = vpop.f32.mrf.mxu0
      %v2041 = vadd.f32 0.0, %v2040
      %2042 = vmatmul.f32.gmra.mxu0 %v2012
      %v2043 = vpop.f32.mrf.mxu0
      %v2044 = vadd.f32 0.0, %v2043
      %2045 = vmatmul.f32.gmra.mxu0 %v2015
      %v2046 = vpop.f32.mrf.mxu0
      %v2047 = vadd.f32 0.0, %v2046
      %2048 = vmatmul.f32.gmra.mxu0 %v2018
      %v2049 = vpop.f32.mrf.mxu0
      %v2050 = vadd.f32 0.0, %v2049
      %2051 = vmatmul.f32.gmra.mxu0 %v2021
      %v2052 = vpop.f32.mrf.mxu0
      %v2053 = vadd.f32 0.0, %v2052
      %2054 = vdwg.mxu0
      %v2055 = vadd.f32 %v1996, %v2041
      %v2056 = vadd.f32 %v1997, %v2044
      %v2057 = vadd.f32 %v1998, %v2047
      %v2058 = vadd.f32 %v1999, %v2050
      %v2059 = vadd.f32 %v2000, %v2053
      %v2060 = vld [vmem:[%s7] sm:$0x1]
      %v2062 = vperm.slane %v2060, 0
      %v2064 = vadd.f32 %v2055, %v2062
      %v2065 = vadd.f32 %v2056, %v2062
      %v2066 = vadd.f32 %v2057, %v2062
      %v2067 = vadd.f32 %v2058, %v2062
      %v2068 = vadd.f32 %v2059, %v2062
      %v2069 = vmax.f32 %v2064, 0.0
      %v2070 = vmax.f32 %v2065, 0.0
      %v2071 = vmax.f32 %v2066, 0.0
      %v2072 = vmax.f32 %v2067, 0.0
      %v2073 = vmax.f32 %v2068, 0.0
      %vm2074 = vcmask 64513
      %2075 = vst.msk [vmem:[%s477 - $0x1] sm:$0xfe] %vm2074, %v2069
      %2076 = vst.msk [vmem:[%s477 + $0x7] sm:$0x1] %vm1399, %v2070
      %s2077 = scalar_lea.vmem %s477, 8
      %vm2078 = vcmask 64515
      %2079 = vst.msk [vmem:[%s2077 - $0x3] sm:$0xf8] %vm2078, %v2070
      %vm2080 = vcmask 59392
      %2081 = vst.msk [vmem:[%s2077 + $0x5] sm:$0x7] %vm2080, %v2071
      %s2082 = scalar_lea.vmem %s477, 16
      %vm2083 = vcmask 64517
      %2084 = vst.msk [vmem:[%s2082 - $0x5] sm:$0xe0] %vm2083, %v2071
      %vm2085 = vcmask 61440
      %2086 = vst.msk [vmem:[%s2082 + $0x3] sm:$0x1f] %vm2085, %v2072
      %s2087 = scalar_lea.vmem %s477, 24
      %vm2088 = vcmask 64519
      %2089 = vst.msk [vmem:[%s2087 - $0x7] sm:$0x80] %vm2088, %v2072
      %vm2090 = vcmask 63488
      %2091 = vst.msk [vmem:[%s2087 + $0x1] sm:$0x7f] %vm2090, %v2073
      %s2092 = smul.u32 4, %s24
      %p2093 = scmp.lt.s32.totalorder %s23, 1
      %s2094 = scalar_select %p2093, %s23, 1
      %p2095 = scmp.lt.s32.totalorder %s2092, 7
      %s2096 = scalar_select %p2095, %s2092, 7
      %s2097 = smul.addr %s2094, 8
      %s2098 = sadd.s32 %s2096, %s2097
      %s2099 = smul.addr %s2098, 8
      %s2100 = scalar_lea.vmem %s8, %s2099
      // Predicated region
      $region53: #{down_forward.1} parent=51 // pred_check
        %p2101 = pneg %p251
      $region54: #{down_forward.1} parent=51 // pred_check_branch
        %2103 = sbr.rel (%p2101) target = $region56
      $region55: #{down_forward.1} parent=51 // pred_region
        %s2104 = smul.u32 4, %s24
      $region56: #{down_forward.1} parent=51 // pred_fallthru
        _
    $region52: #{down_forward.1} parent=5 // pred_fallthru
      _
    %p2105 = scmp.le.s32.totalorder 2, %s14
    // Predicated region
    $region57: #{down_forward.1} parent=5 // pred_check
      %p2106 = pneg %p2105
    $region58: #{down_forward.1} parent=5 // pred_check_branch
      %2108 = sbr.rel (%p2106) target = $region60
    $region59: #{down_forward.1} parent=5 // pred_region
      %s2109 = ssub.s32 %s14, 2
      // Predicated region
      $region61: #{down_forward.1} parent=59 // pred_check
        %p2110 = pneg %p257
      $region62: #{down_forward.1} parent=59 // pred_check_branch
        %2112 = sbr.rel (%p2110) target = $region64
      $region63: #{down_forward.1} parent=59 // pred_region
        %s2113 = smul.u32 4, %s26
        %p2114 = scmp.lt.s32.totalorder %s25, 1
        %s2115 = scalar_select %p2114, %s25, 1
        %p2116 = scmp.lt.s32.totalorder %s2113, 7
        %s2117 = scalar_select %p2116, %s2113, 7
        %s2118 = smul.addr %s2115, 8
        %s2119 = sadd.s32 %s2117, %s2118
        %s2120 = smul.addr %s2119, 8
        %s2121 = scalar_lea.vmem %s8, %s2120
      $region64: #{down_forward.1} parent=59 // pred_fallthru
        _
    $region60: #{down_forward.1} parent=5 // pred_fallthru
      _
  $region6: #{down_forward.1} parent=0 // loop_footer
    %s18 = sadd.s32 1, %s14
  $region7: #{down_forward.1} parent=0 // loop_footer_branch
    %13 = sbr.rel target = $region3
  $region8: #{down_forward.1} parent=0 // loop_exit
    _

</llo_original>
